<compile_context>
chip_gen: v7x
topology: tpu7x:2x2x1
jax: 0.10.0
libtpu: 0.0.40
codegen_flags: <defaults>
</compile_context>

<pallas_src>
from functools import partial

import jax
import jax.numpy as jnp
from jax import lax
from jax.experimental import pallas as pl
from jax.experimental.pallas import tpu as pltpu


_NT = (((1,), (1,)), ((), ()))     # contract last-vs-last: x @ W^T without .T


# ------------------------------------------------------------------ kernel

def _fused_sampled_mlp_kernel(x_ref, w_ref, g_ref, o_ref, act_ref, gprev_ref,
                              *, num_layers, num_samples):
    """grid = (num_layers,) ("arbitrary").  One grid step = one layer.

      x_ref    : (B, D)        input activations (read at layer 0 only)
      w_ref    : (1, D, D)     this layer's weight W_l          (compute dtype)
      g_ref    : (1, S, D, D)  this layer's group samples g_l   (compute dtype)
                               orthogonal group: g_inv_l = g_l^T,
                               g_tilde_l = g_{l-1} (identity at layer 0)
      o_ref    : (B, D)        output (written on the last layer)
      act_ref  : (B, D) f32    VMEM-resident activation carried across layers
      gprev_ref: (S, D, D)     VMEM-resident copy of the previous layer's g
                               (= g_tilde for this layer); read from HBM once.
    """
    layer = pl.program_id(0)
    last = num_layers - 1
    S = num_samples
    inv_s = 1.0 / num_samples

    w = w_ref[0]                        # (D, D)  compute dtype
    g_cur = g_ref[0]                    # (S, D, D) compute dtype
    D = w.shape[0]
    cdt = w.dtype

    # ---- layer 0: g_tilde = I  =>  W_bar = (mean_s g^T) @ W  and
    #      y = x @ W_bar^T = (x @ W^T) @ mean_s(g).
    #      Skips the S*D^3 per-sample work and ships no identity block.
    @pl.when(layer == 0)
    def _():
        g_bar = jnp.sum(g_cur.astype(jnp.float32), axis=0) * inv_s       # (D, D)
        h = lax.dot_general(x_ref[...].astype(cdt), w, _NT,
                            preferred_element_type=jnp.float32)          # (B, D)
        y = jnp.dot(h.astype(cdt), g_bar.astype(cdt),
                    preferred_element_type=jnp.float32)                  # (B, D)
        act_ref[...] = y

    # ---- layers l > 0:  W_bar = (1/S) sum_s g_l[s]^T @ W_l @ g_{l-1}[s]
    @pl.when(layer > 0)
    def _():
        gt = gprev_ref[...]                                              # (S, D, D)
        # Stage 1: per-sample W @ g_tilde[s] (batched MXU matmul, shared lhs).
        w_b = jnp.broadcast_to(w, (S, D, D))
        wgt = jnp.einsum("sab,sbj->saj", w_b, gt,
                         preferred_element_type=jnp.float32)             # (S, D, D)
        # Stage 2 fused with the sample mean: ONE long-K contraction
        #   W_bar^T[j, i] = (1/S) sum_{s,a} wgt[s, a, j] * g_cur[s, a, i]
        # K = S*D fills the MXU depth; no f32 (S,D,D) tensor is reduced on the
        # VPU.  The 2-D operand transpose rides the XLU slot.
        wgt_r = wgt.astype(cdt).reshape(S * D, D)                        # ((s,a), j)
        g_r = g_cur.reshape(S * D, D)                                    # ((s,a), i)
        w_bar_t = jnp.dot(wgt_r.T, g_r,
                          preferred_element_type=jnp.float32) * inv_s    # (j, i)
        # y = act @ W_bar^T — already the canonical (M,K)@(K,N) contraction.
        y = jnp.dot(act_ref[...].astype(cdt), w_bar_t.astype(cdt),
                    preferred_element_type=jnp.float32)                  # (B, D)
        act_ref[...] = y

    # ---- carry this layer's g as the next layer's g_tilde; ReLU in between.
    @pl.when(layer < last)
    def _():
        gprev_ref[...] = g_cur
        act_ref[...] = jnp.maximum(act_ref[...], 0.0)

    @pl.when(layer == last)
    def _():
        o_ref[...] = act_ref[...].astype(o_ref.dtype)


# --------------------------------------------------------------- wrapper fn

def _pad_to(a, axis, multiple):
    pad = (-a.shape[axis]) % multiple
    if pad == 0:
        return a
    widths = [(0, 0)] * a.ndim
    widths[axis] = (0, pad)
    return jnp.pad(a, widths)


def _pad_dd(a):
    """Zero-pad the trailing two (D, D) dims to multiples of 128 (lane-dense)."""
    return _pad_to(_pad_to(a, -1, 128), -2, 128)


def sampled_mlp_forward(x, w_all, g_all):
    """x: (B, D) f32; w_all: (L, Dp, Dp) cdt; g_all: (L, S, Dp, Dp) cdt."""
    B, D = x.shape
    L, Dp, _ = w_all.shape
    S = g_all.shape[1]

    x_p = _pad_to(_pad_to(x, 1, 128), 0, 8)     # no-op when D%128==0, B%8==0
    Bp = x_p.shape[0]
    assert x_p.shape[1] == Dp, "x feature dim inconsistent with prepared weights"

    kernel = partial(_fused_sampled_mlp_kernel, num_layers=L, num_samples=S)

    # Rough VMEM budget: double-buffered streamed blocks + resident scratch.
    cdb = jnp.dtype(w_all.dtype).itemsize
    block_bytes = (2 * (Bp * Dp * 4                    # x
                        + Dp * Dp * cdb                # W[l]
                        + S * Dp * Dp * cdb            # g[l]
                        + Bp * Dp * 4)                 # out
                   + Bp * Dp * 4                       # act scratch
                   + S * Dp * Dp * cdb)                # g_prev scratch
    vmem_limit = int(min(100 * 2 ** 20, max(2 * block_bytes, 16 * 2 ** 20)))

    out = pl.pallas_call(
        kernel,
        out_shape=jax.ShapeDtypeStruct((Bp, Dp), x.dtype),
        grid_spec=pltpu.PrefetchScalarGridSpec(
            num_scalar_prefetch=0,
            grid=(L,),
            in_specs=[
                pl.BlockSpec((Bp, Dp), lambda l: (0, 0)),               # x (resident)
                pl.BlockSpec((1, Dp, Dp), lambda l: (l, 0, 0)),         # W[l]
                pl.BlockSpec((1, S, Dp, Dp), lambda l: (l, 0, 0, 0)),   # g[l]
            ],
            out_specs=pl.BlockSpec((Bp, Dp), lambda l: (0, 0)),
            scratch_shapes=[
                pltpu.VMEM((Bp, Dp), jnp.float32),      # activation carry
                pltpu.VMEM((S, Dp, Dp), w_all.dtype),   # previous layer's g
            ],
        ),
        compiler_params=pltpu.CompilerParams(
            dimension_semantics=("arbitrary",),          # layers are sequential
            vmem_limit_bytes=vmem_limit),
    )(x_p, w_all, g_all)
    return out[:B, :D]


# ------------------------------------------------------- group & wrapper

class OrthogonalMatrixGroup:
    """MatrixManifold stand-in: random D x D orthogonal matrices (g_inv = g^T)."""

    def __init__(self, dim):
        self.dim = dim

    def sample_stacked(self, key, num_layers, num_gsamples):
        m = jax.random.normal(
            key, (num_layers, num_gsamples, self.dim, self.dim),
            dtype=jnp.float32)
        q, _ = jnp.linalg.qr(m)
        return q                                   # g;  g_inv = swapaxes(q,-1,-2)


class SamplingWrapper:
    """JAX/Pallas port of rgenn.models.SamplingWrapper around a stack of
    sampled linear layers (the concrete 'sampling layers')."""

    def __init__(self, weights, num_gsamples, group,
                 sample_inference=True, deterministic=False,
                 compute_dtype=jnp.bfloat16):
        self.num_gsamples = num_gsamples
        self.group = group
        self.sample_inference = sample_inference
        self.deterministic = deterministic
        self.compute_dtype = compute_dtype
        self.dim = weights[0].shape[0]
        self.num_layers = len(weights)
        # Stack / pad / cast the weights ONCE (not every forward).
        self._w_all = jnp.stack([_pad_dd(w) for w in weights]).astype(compute_dtype)
        self._g_all = None
        if self.deterministic:
            self.sample(jax.random.PRNGKey(42))

    def set_numgsamples(self, num_gsamples):
        assert num_gsamples > 0
        self.num_gsamples = num_gsamples

    def sample(self, key):
        """Draw g per layer (g_tilde chained as the previous layer's g).
        Orthogonal group: g_inv = g^T is expressed inside the kernel, so only
        ONE stacked tensor — already padded and in compute dtype — is stored."""
        # TODO(synk): general (non-orthogonal) groups need an explicit g_inv
        # tensor shipped alongside g (two-tensor path).
        g = self.group.sample_stacked(key, self.num_layers, self.num_gsamples)
        self._g_all = _pad_dd(g).astype(self.compute_dtype)   # (L, S, Dp, Dp)

    # NOTE: sampling mutates Python state; keep it outside jax.jit (the Pallas
    # forward itself is purely functional).
    def forward(self, x, key, training=False):
        if not self.deterministic and (training or self.sample_inference):
            self.sample(key)
        return sampled_mlp_forward(x, self._w_all, self._g_all)

    __call__ = forward


# --------------------------------------------------------------- example

if __name__ == "__main__":
    # TPU-friendly small shapes: lane-dense feature dim, batch multiple of 8.
    B, D, S, L = 8, 128, 4, 3   # batch, feature dim, group samples, layers

    root = jax.random.PRNGKey(0)
    k_x, k_w, k_fwd = jax.random.split(root, 3)

    w_keys = jax.random.split(k_w, L)
    weights = [jax.random.normal(k, (D, D), dtype=jnp.float32) / jnp.sqrt(D)
               for k in w_keys]
    x = jax.random.normal(k_x, (B, D), dtype=jnp.float32)

    wrapper = SamplingWrapper(weights, num_gsamples=S,
                              group=OrthogonalMatrixGroup(D),
                              sample_inference=True, deterministic=False)

    y = wrapper(x, k_fwd)
    jax.block_until_ready(y)
    assert y.shape == (B, D) and y.dtype == jnp.float32

    # Pure-JAX reference mirroring the kernel math (bf16 operands, f32 accum,
    # g_inv = g^T, g_tilde = previous layer's g, identity skipped at layer 0).
    cdt = wrapper.compute_dtype
    g_all = wrapper._g_all[:, :, :D, :D]           # (L, S, D, D) compute dtype
    ref = x
    for l in range(L):
        w_c = weights[l].astype(cdt)
        g_c = g_all[l]
        if l == 0:
            g_bar = jnp.mean(g_c.astype(jnp.float32), axis=0)
            h = jnp.einsum("bj,aj->ba", ref.astype(cdt), w_c,
                           preferred_element_type=jnp.float32)
            ref = jnp.einsum("ba,ai->bi", h.astype(cdt), g_bar.astype(cdt),
                             preferred_element_type=jnp.float32)
        else:
            gt_c = g_all[l - 1]
            wgt = jnp.einsum("ab,sbj->saj", w_c, gt_c,
                             preferred_element_type=jnp.float32)
            w_bar_t = jnp.einsum("saj,sai->ji", wgt.astype(cdt), g_c,
                                 preferred_element_type=jnp.float32) / S
            ref = jnp.einsum("bj,ji->bi", ref.astype(cdt), w_bar_t.astype(cdt),
                             preferred_element_type=jnp.float32)
        if l < L - 1:
            ref = jnp.maximum(ref, 0.0)

    assert jnp.allclose(y, ref, atol=2e-3, rtol=2e-3), \
        float(jnp.max(jnp.abs(y - ref)))

    print("KERNEL_OK")
</pallas_src>

<mosaic_0001>
module attributes {stable_mosaic.version = 11 : i64} {
  func.func @_fused_sampled_mlp_kernel(%arg0: i32, %arg1: memref<8x128xf32, #tpu.memory_space<vmem>>, %arg2: memref<1x128x128xbf16, #tpu.memory_space<vmem>>, %arg3: memref<1x4x128x128xbf16, #tpu.memory_space<vmem>>, %arg4: memref<8x128xf32, #tpu.memory_space<vmem>>, %arg5: memref<8x128xf32, #tpu.memory_space<vmem>>, %arg6: memref<4x128x128xbf16, #tpu.memory_space<vmem>>) attributes {dimension_semantics = [#tpu.dimension_semantics<arbitrary>], iteration_bounds = array<i64: 3>, scalar_prefetch = 0 : i64, scratch_operands = 2 : i64, tpu.core_type = #tpu.core_type<tc>, window_params = [{pipeline_mode = #tpu.pipeline_mode<synchronous>, transform_indices = @transform_0, window_bounds = array<i64: 8, 128>}, {transform_indices = @transform_1, window_bounds = array<i64: 1, 128, 128>}, {transform_indices = @transform_2, window_bounds = array<i64: 1, 4, 128, 128>}, {pipeline_mode = #tpu.pipeline_mode<synchronous>, transform_indices = @transform_3, window_bounds = array<i64: 8, 128>}]} {
    %c0 = arith.constant 0 : index
    %c0_0 = arith.constant 0 : index
    %c0_1 = arith.constant 0 : index
    %0 = vector.load %arg2[%c0, %c0_0, %c0_1] : memref<1x128x128xbf16, #tpu.memory_space<vmem>>, vector<1x128x128xbf16>
    %1 = vector.shape_cast %0 : vector<1x128x128xbf16> to vector<128x128xbf16>
    %c0_2 = arith.constant 0 : index
    %c0_3 = arith.constant 0 : index
    %c0_4 = arith.constant 0 : index
    %c0_5 = arith.constant 0 : index
    %2 = vector.load %arg3[%c0_2, %c0_3, %c0_4, %c0_5] : memref<1x4x128x128xbf16, #tpu.memory_space<vmem>>, vector<1x4x128x128xbf16>
    %3 = vector.shape_cast %2 : vector<1x4x128x128xbf16> to vector<4x128x128xbf16>
    %c0_i32 = arith.constant 0 : i32
    %4 = arith.cmpi eq, %arg0, %c0_i32 : i32
    %5 = arith.extui %4 : i1 to i32
    %c0_i32_6 = arith.constant 0 : i32
    %6 = arith.cmpi ne, %5, %c0_i32_6 : i32
    scf.if %6 {
      %16 = arith.extf %3 : vector<4x128x128xbf16> to vector<4x128x128xf32>
      %cst = arith.constant dense<0.000000e+00> : vector<128x128xf32>
      %17 = vector.multi_reduction <add>, %16, %cst [0] : vector<4x128x128xf32> to vector<128x128xf32>
      %cst_12 = arith.constant 2.500000e-01 : f32
      %18 = vector.broadcast %cst_12 : f32 to vector<128x128xf32>
      %19 = arith.mulf %17, %18 : vector<128x128xf32>
      %c0_13 = arith.constant 0 : index
      %c0_14 = arith.constant 0 : index
      %20 = vector.load %arg1[%c0_13, %c0_14] : memref<8x128xf32, #tpu.memory_space<vmem>>, vector<8x128xf32>
      %21 = arith.truncf %20 : vector<8x128xf32> to vector<8x128xbf16>
      %cst_15 = arith.constant dense<0.000000e+00> : vector<8x128xf32>
      %22 = tpu.matmul %21, %1, %cst_15 {dimension_numbers = #tpu.dot_dimension_numbers<[1], [1], [0], [0], [0, 0, 1, 0], [], []>} : vector<8x128xbf16>, vector<128x128xbf16>, vector<8x128xf32> -> vector<8x128xf32>
      %23 = arith.truncf %22 : vector<8x128xf32> to vector<8x128xbf16>
      %24 = arith.truncf %19 : vector<128x128xf32> to vector<128x128xbf16>
      %cst_16 = arith.constant dense<0.000000e+00> : vector<8x128xf32>
      %25 = tpu.matmul %23, %24, %cst_16 {dimension_numbers = #tpu.dot_dimension_numbers<[1], [0], [0], [1], [0, 0, 1, 1], [], []>} : vector<8x128xbf16>, vector<128x128xbf16>, vector<8x128xf32> -> vector<8x128xf32>
      %c0_17 = arith.constant 0 : index
      %c0_18 = arith.constant 0 : index
      %26 = vector.load %arg5[%c0_17, %c0_18] : memref<8x128xf32, #tpu.memory_space<vmem>>, vector<8x128xf32>
      tpu.vector_store %arg5[%c0_17, %c0_18], %25 {strides = array<i32>} : memref<8x128xf32, #tpu.memory_space<vmem>>, vector<8x128xf32>,
    } else {
    }
    %c0_i32_7 = arith.constant 0 : i32
    %7 = arith.cmpi sgt, %arg0, %c0_i32_7 : i32
    %8 = arith.extui %7 : i1 to i32
    %c0_i32_8 = arith.constant 0 : i32
    %9 = arith.cmpi ne, %8, %c0_i32_8 : i32
    scf.if %9 {
      %c0_12 = arith.constant 0 : index
      %c0_13 = arith.constant 0 : index
      %c0_14 = arith.constant 0 : index
      %16 = vector.load %arg6[%c0_12, %c0_13, %c0_14] : memref<4x128x128xbf16, #tpu.memory_space<vmem>>, vector<4x128x128xbf16>
      %17 = vector.shape_cast %1 : vector<128x128xbf16> to vector<1x128x128xbf16>
      %18 = vector.broadcast %17 : vector<1x128x128xbf16> to vector<4x128x128xbf16>
      "tpu.trace_start"() <{level = 10 : i32, message = "sab,sbj->saj"}> : () -> ()
      %cst = arith.constant dense<0.000000e+00> : vector<4x128x128xf32>
      %19 = tpu.matmul %18, %16, %cst {dimension_numbers = #tpu.dot_dimension_numbers<[2], [1], [1], [2], [0, 0, 0, 1, 1, 2], [0], [0]>} : vector<4x128x128xbf16>, vector<4x128x128xbf16>, vector<4x128x128xf32> -> vector<4x128x128xf32>
      "tpu.trace_stop"() : () -> ()
      %20 = arith.truncf %19 : vector<4x128x128xf32> to vector<4x128x128xbf16>
      %21 = vector.shape_cast %20 : vector<4x128x128xbf16> to vector<512x128xbf16>
      %22 = vector.shape_cast %3 : vector<4x128x128xbf16> to vector<512x128xbf16>
      %23 = tpu.transpose %21, [1, 0] : vector<512x128xbf16> -> vector<128x512xbf16>
      %cst_15 = arith.constant dense<0.000000e+00> : vector<128x128xf32>
      %24 = tpu.matmul %23, %22, %cst_15 {dimension_numbers = #tpu.dot_dimension_numbers<[1], [0], [0], [1], [0, 0, 1, 1], [], []>} : vector<128x512xbf16>, vector<512x128xbf16>, vector<128x128xf32> -> vector<128x128xf32>
      %cst_16 = arith.constant 2.500000e-01 : f32
      %25 = vector.broadcast %cst_16 : f32 to vector<128x128xf32>
      %26 = arith.mulf %24, %25 : vector<128x128xf32>
      %c0_17 = arith.constant 0 : index
      %c0_18 = arith.constant 0 : index
      %27 = vector.load %arg5[%c0_17, %c0_18] : memref<8x128xf32, #tpu.memory_space<vmem>>, vector<8x128xf32>
      %28 = arith.truncf %27 : vector<8x128xf32> to vector<8x128xbf16>
      %29 = arith.truncf %26 : vector<128x128xf32> to vector<128x128xbf16>
      %cst_19 = arith.constant dense<0.000000e+00> : vector<8x128xf32>
      %30 = tpu.matmul %28, %29, %cst_19 {dimension_numbers = #tpu.dot_dimension_numbers<[1], [0], [0], [1], [0, 0, 1, 1], [], []>} : vector<8x128xbf16>, vector<128x128xbf16>, vector<8x128xf32> -> vector<8x128xf32>
      %c0_20 = arith.constant 0 : index
      %c0_21 = arith.constant 0 : index
      %31 = vector.load %arg5[%c0_20, %c0_21] : memref<8x128xf32, #tpu.memory_space<vmem>>, vector<8x128xf32>
      tpu.vector_store %arg5[%c0_20, %c0_21], %30 {strides = array<i32>} : memref<8x128xf32, #tpu.memory_space<vmem>>, vector<8x128xf32>,
    } else {
    }
    %c2_i32 = arith.constant 2 : i32
    %10 = arith.cmpi slt, %arg0, %c2_i32 : i32
    %11 = arith.extui %10 : i1 to i32
    %c0_i32_9 = arith.constant 0 : i32
    %12 = arith.cmpi ne, %11, %c0_i32_9 : i32
    scf.if %12 {
      %c0_12 = arith.constant 0 : index
      %c0_13 = arith.constant 0 : index
      %c0_14 = arith.constant 0 : index
      %16 = vector.load %arg6[%c0_12, %c0_13, %c0_14] : memref<4x128x128xbf16, #tpu.memory_space<vmem>>, vector<4x128x128xbf16>
      tpu.vector_store %arg6[%c0_12, %c0_13, %c0_14], %3 {strides = array<i32>} : memref<4x128x128xbf16, #tpu.memory_space<vmem>>, vector<4x128x128xbf16>,
      %c0_15 = arith.constant 0 : index
      %c0_16 = arith.constant 0 : index
      %17 = vector.load %arg5[%c0_15, %c0_16] : memref<8x128xf32, #tpu.memory_space<vmem>>, vector<8x128xf32>
      %cst = arith.constant 0.000000e+00 : f32
      %18 = vector.broadcast %cst : f32 to vector<8x128xf32>
      %19 = arith.maximumf %17, %18 : vector<8x128xf32>
      %c0_17 = arith.constant 0 : index
      %c0_18 = arith.constant 0 : index
      %20 = vector.load %arg5[%c0_17, %c0_18] : memref<8x128xf32, #tpu.memory_space<vmem>>, vector<8x128xf32>
      tpu.vector_store %arg5[%c0_17, %c0_18], %19 {strides = array<i32>} : memref<8x128xf32, #tpu.memory_space<vmem>>, vector<8x128xf32>,
    } else {
    }
    %c2_i32_10 = arith.constant 2 : i32
    %13 = arith.cmpi eq, %arg0, %c2_i32_10 : i32
    %14 = arith.extui %13 : i1 to i32
    %c0_i32_11 = arith.constant 0 : i32
    %15 = arith.cmpi ne, %14, %c0_i32_11 : i32
    scf.if %15 {
      %c0_12 = arith.constant 0 : index
      %c0_13 = arith.constant 0 : index
      %16 = vector.load %arg5[%c0_12, %c0_13] : memref<8x128xf32, #tpu.memory_space<vmem>>, vector<8x128xf32>
      %c0_14 = arith.constant 0 : index
      %c0_15 = arith.constant 0 : index
      %17 = vector.load %arg4[%c0_14, %c0_15] : memref<8x128xf32, #tpu.memory_space<vmem>>, vector<8x128xf32>
      tpu.vector_store %arg4[%c0_14, %c0_15], %16 {strides = array<i32>} : memref<8x128xf32, #tpu.memory_space<vmem>>, vector<8x128xf32>,
    } else {
    }
    return
  }
  func.func @transform_0(%arg0: i32) -> (i32, i32) {
    %c0_i32 = arith.constant 0 : i32
    %c0_i32_0 = arith.constant 0 : i32
    %c0_i32_1 = arith.constant 0 : i32
    return %c0_i32, %c0_i32_0 : i32, i32
  }
  func.func @transform_1(%arg0: i32) -> (i32, i32, i32) {
    %c0_i32 = arith.constant 0 : i32
    %c0_i32_0 = arith.constant 0 : i32
    %c0_i32_1 = arith.constant 0 : i32
    return %arg0, %c0_i32, %c0_i32_0 : i32, i32, i32
  }
  func.func @transform_2(%arg0: i32) -> (i32, i32, i32, i32) {
    %c0_i32 = arith.constant 0 : i32
    %c0_i32_0 = arith.constant 0 : i32
    %c0_i32_1 = arith.constant 0 : i32
    %c0_i32_2 = arith.constant 0 : i32
    return %arg0, %c0_i32, %c0_i32_0, %c0_i32_1 : i32, i32, i32, i32
  }
  func.func @transform_3(%arg0: i32) -> (i32, i32) {
    %c0_i32 = arith.constant 0 : i32
    %c0_i32_0 = arith.constant 0 : i32
    %c0_i32_1 = arith.constant 0 : i32
    return %c0_i32, %c0_i32_0 : i32, i32
  }
}

</mosaic_0001>

<llo_original>
// kernel: tpu_custom_call.1
$region0: #{tpu_custom_call.1}
  #allocation0 [shape = 'u32[]', space=smem, size = 0x4, offset = 0x4, fixed_abs, tag = 'smem constant byte address 0x4 - core index']
  #allocation1 [shape = 'u32[144,128]{1,0:T(1,128)}', space=vmem, size = 0x12000, scoped, tag = 'internal scratch']
  #allocation2 [shape = 'f32[8,128]{1,0:T(8,128)}', space=vmem, size = 0x1000, scoped, tag = 'scratch operand']
  #allocation3 [shape = 'bf16[4,128,128]{2,1,0:T(16,128)(2,1)}', space=vmem, size = 0x20000, scoped, tag = 'scratch operand']
  %s0 = inlined_call_operand.hbm [shape: f32[8,128], index: 0, kind: input, shape index: {}]
  %s1 = inlined_call_operand.hbm [shape: bf16[3,128,128], index: 1, kind: input, shape index: {}]
  %s2 = inlined_call_operand.hbm [shape: bf16[3,4,128,128], index: 2, kind: input, shape index: {}]
  %s3 = inlined_call_operand.hbm [shape: f32[8,128], index: 3, kind: output, shape index: {}]
  %s4 = sld [smem:[#allocation0]]
  $region73: #{tpu_custom_call.1} parent=0
    _
  %s6 = ssub.s32 1, %s4
  %s7 = scalar_select 0, %s6, %s4
  $region1: #{tpu_custom_call.1} parent=0
    #allocation4 [shape = 'u8[4096]{0}', space=vmem, size = 0x1000, scoped, tag = 'input window, operand 0, single buffered']
    #allocation5 [shape = 's32[2]{0}', space=sflag, size = 0x8, scoped, tag = 'scoped memory for tpu_custom_call.1']
    #allocation6 [shape = 's32[2]{0}', space=sflag, size = 0x8, scoped, tag = 'scoped memory for tpu_custom_call.1']
    #allocation7 [shape = 'u8[65536]{0}', space=vmem, size = 0x10000, scoped, tag = 'input window, operand 1']
    #allocation8 [shape = 's32[2]{0}', space=sflag, size = 0x8, scoped, tag = 'scoped memory for tpu_custom_call.1']
    #allocation9 [shape = 'u8[262144]{0}', space=vmem, size = 0x40000, scoped, tag = 'input window, operand 2']
    #allocation10 [shape = 'u8[4096]{0}', space=vmem, size = 0x1000, scoped, tag = 'output window, operand 0, single buffered']
    %8 = vsyncpa [#allocation5], 0
    %9 = vsyncpa [#allocation8], 0
    %s10 = scalar_lea.sflag [#allocation8], 1
    %11 = vsyncpa %s10, 0
    %12 = vsyncpa [#allocation6], 0
    loop: start=0, step=1, limit=5
    $region2: #{tpu_custom_call.1} parent=1 // loop_pre_header
      _
    $region3: #{tpu_custom_call.1} parent=1 // loop_header
      %s14 = sphi 0, %s18
      %p15 = scmp.ge.s32.totalorder %s14, 5
      %s22 = sphi 0, %s22
      %s24 = sphi 0, %s22
      %s25 = sphi 0, %s24
      %s39 = sphi 0, %s25
      %s45 = sphi 0, %s47
      %s48 = sphi 0, %s45
      %s49 = sphi 0, %s48
      %s65 = sphi 0, %s49
      %s71 = sphi 0, %s73
      %s74 = sphi 0, %s71
      %s75 = sphi 0, %s74
      %s91 = sphi 0, %s75
      %s95 = sphi 0, %s95
      %s97 = sphi 0, %s95
      %s98 = sphi 0, %s97
      %s112 = sphi 0, %s98
    $region4: #{tpu_custom_call.1} parent=1 // loop_header_branch
      %17 = sbr.rel (%p15) target = $region8
    $region5: #{tpu_custom_call.1} parent=1 // loop_body
      %s19 = ssub.s32 %s14, 1
      %s20 = ssub.s32 %s14, 2
      %s21 = sadd.s32 %s14, 1
      %s23 = sadd.s32 %s22, 1
      %p26 = scmp.eq.s32.totalorder %s14, 2
      %p27 = scmp.ne.s32.totalorder %s22, %s24
      %p28 = scmp.eq.s32.totalorder %s14, 0
      %p29 = por %p27, %p28
      %p30 = scmp.ne.s32.totalorder %s22, %s24
      %p31 = scmp.eq.s32.totalorder %s19, 2
      %p32 = por %p30, %p31
      %p33 = scmp.ne.s32.totalorder %s24, %s25
      %p34 = scmp.eq.s32.totalorder %s19, 0
      %p35 = por %p33, %p34
      %p36 = scmp.ne.s32.totalorder %s24, %s25
      %p37 = scmp.eq.s32.totalorder %s20, 2
      %p38 = por %p36, %p37
      %p40 = scmp.ne.s32.totalorder %s25, %s39
      %p41 = scmp.eq.s32.totalorder %s20, 0
      %p42 = por %p40, %p41
      %s43 = ssub.s32 %s14, %s21
      %p44 = scmp.eq.s32.totalorder %s43, 0
      %s46 = sadd.s32 %s45, 1
      %s47 = scalar_select %p44, %s45, %s46
      %p50 = pneg %p44
      %p51 = scmp.eq.s32.totalorder %s14, 2
      %p52 = por %p50, %p51
      %p53 = scmp.ne.s32.totalorder %s45, %s48
      %p54 = scmp.eq.s32.totalorder %s14, 0
      %p55 = por %p53, %p54
      %p56 = scmp.ne.s32.totalorder %s45, %s48
      %p57 = scmp.eq.s32.totalorder %s19, 2
      %p58 = por %p56, %p57
      %p59 = scmp.ne.s32.totalorder %s48, %s49
      %p60 = scmp.eq.s32.totalorder %s19, 0
      %p61 = por %p59, %p60
      %p62 = scmp.ne.s32.totalorder %s48, %s49
      %p63 = scmp.eq.s32.totalorder %s20, 2
      %p64 = por %p62, %p63
      %p66 = scmp.ne.s32.totalorder %s49, %s65
      %p67 = scmp.eq.s32.totalorder %s20, 0
      %p68 = por %p66, %p67
      %s69 = ssub.s32 %s14, %s21
      %p70 = scmp.eq.s32.totalorder %s69, 0
      %s72 = sadd.s32 %s71, 1
      %s73 = scalar_select %p70, %s71, %s72
      %p76 = pneg %p70
      %p77 = scmp.eq.s32.totalorder %s14, 2
      %p78 = por %p76, %p77
      %p79 = scmp.ne.s32.totalorder %s71, %s74
      %p80 = scmp.eq.s32.totalorder %s14, 0
      %p81 = por %p79, %p80
      %p82 = scmp.ne.s32.totalorder %s71, %s74
      %p83 = scmp.eq.s32.totalorder %s19, 2
      %p84 = por %p82, %p83
      %p85 = scmp.ne.s32.totalorder %s74, %s75
      %p86 = scmp.eq.s32.totalorder %s19, 0
      %p87 = por %p85, %p86
      %p88 = scmp.ne.s32.totalorder %s74, %s75
      %p89 = scmp.eq.s32.totalorder %s20, 2
      %p90 = por %p88, %p89
      %p92 = scmp.ne.s32.totalorder %s75, %s91
      %p93 = scmp.eq.s32.totalorder %s20, 0
      %p94 = por %p92, %p93
      %s96 = sadd.s32 %s95, 1
      %p99 = scmp.eq.s32.totalorder %s14, 2
      %p100 = scmp.ne.s32.totalorder %s95, %s97
      %p101 = scmp.eq.s32.totalorder %s14, 0
      %p102 = por %p100, %p101
      %p103 = scmp.ne.s32.totalorder %s95, %s97
      %p104 = scmp.eq.s32.totalorder %s19, 2
      %p105 = por %p103, %p104
      %p106 = scmp.ne.s32.totalorder %s97, %s98
      %p107 = scmp.eq.s32.totalorder %s19, 0
      %p108 = por %p106, %p107
      %p109 = scmp.ne.s32.totalorder %s97, %s98
      %p110 = scmp.eq.s32.totalorder %s20, 2
      %p111 = por %p109, %p110
      %p113 = scmp.ne.s32.totalorder %s98, %s112
      %p114 = scmp.eq.s32.totalorder %s20, 0
      %p115 = por %p113, %p114
      %p116 = scmp.le.s32.totalorder 1, %s14
      %p117 = scmp.lt.s32.totalorder %s14, 4
      %p118 = pnand %p116, %p117
      %p119 = pneg %p118
      // Predicated region
      $region9: #{tpu_custom_call.1} parent=5 // pred_check
        _
      $region10: #{tpu_custom_call.1} parent=5 // pred_check_branch
        %121 = sbr.rel (%p118) target = $region12
      $region11: #{tpu_custom_call.1} parent=5 // pred_region
        %s122 = ssub.s32 %s14, 1
        // Predicated region
        $region13: #{tpu_custom_call.1} parent=11 // pred_check
          %p123 = pneg %p35
        $region14: #{tpu_custom_call.1} parent=11 // pred_check_branch
          %125 = sbr.rel (%p123) target = $region16
        $region15: #{tpu_custom_call.1} parent=11 // pred_region
          %s127 = ssub.s32 128, 128
          %128 = vsyncadd [#allocation5], %s127
          %s130 = sshll.u32 [#allocation4], 4
          %s131 = int_to_ptr.vmem [resolvable:$true] %s130
          %133 = dma.hbm_to_vmem [thread:$0]  %s0, 128, %s131, [#allocation5]
        $region16: #{tpu_custom_call.1} parent=11 // pred_fallthru
          _
      $region12: #{tpu_custom_call.1} parent=5 // pred_fallthru
        _
      %p134 = scmp.lt.s32.totalorder %s14, 3
      // Predicated region
      $region17: #{tpu_custom_call.1} parent=5 // pred_check
        %p135 = pneg %p134
      $region18: #{tpu_custom_call.1} parent=5 // pred_check_branch
        %137 = sbr.rel (%p135) target = $region20
      $region19: #{tpu_custom_call.1} parent=5 // pred_region
        // Predicated region
        $region21: #{tpu_custom_call.1} parent=19 // pred_check
          %p138 = pneg %p55
        $region22: #{tpu_custom_call.1} parent=19 // pred_check_branch
          %140 = sbr.rel (%p138) target = $region24
        $region23: #{tpu_custom_call.1} parent=19 // pred_region
          %s141 = sand.u32 %s14, 1
          %s142 = scalar_lea.sflag [#allocation8], %s141
          %s143 = sand.u32 %s45, 1
          %s144 = smul.addr %s143, 64
          %s145 = scalar_lea.vmem [#allocation7], %s144
          %s147 = ssub.s32 1024, 1024
          %148 = vsyncadd %s142, %s147
          %s149 = smul.addr %s14, 16
          %s150 = smul.addr %s149, 64
          %s151 = scalar_lea.hbm %s1, %s150
          %s152 = sshll.u32 %s145, 4
          %s153 = int_to_ptr.vmem [resolvable:$true] %s152
          %158 = dma.hbm_to_vmem [thread:$0]  %s151, 1024, %s153, %s142, 64, 64, 4
        $region24: #{tpu_custom_call.1} parent=19 // pred_fallthru
          _
        // Predicated region
        $region25: #{tpu_custom_call.1} parent=19 // pred_check
          %p159 = pneg %p81
        $region26: #{tpu_custom_call.1} parent=19 // pred_check_branch
          %161 = sbr.rel (%p159) target = $region28
        $region27: #{tpu_custom_call.1} parent=19 // pred_region
          %s162 = sand.u32 %s14, 1
          %s163 = scalar_lea.sflag [#allocation8], %s162
          %s164 = sand.u32 %s71, 1
          %s165 = smul.addr %s164, 256
          %s166 = scalar_lea.vmem [#allocation9], %s165
          %s168 = ssub.s32 4096, 4096
          %169 = vsyncadd %s163, %s168
          %s170 = smul.addr %s14, 64
          %s171 = smul.addr %s170, 64
          %s172 = scalar_lea.hbm %s2, %s171
          %s173 = sshll.u32 %s166, 4
          %s174 = int_to_ptr.vmem [resolvable:$true] %s173
          %179 = dma.hbm_to_vmem [thread:$0]  %s172, 4096, %s174, %s163, 64, 64, 4
        $region28: #{tpu_custom_call.1} parent=19 // pred_fallthru
          _
      $region20: #{tpu_custom_call.1} parent=5 // pred_fallthru
        _
      %p180 = scmp.le.s32.totalorder 1, %s14
      %p181 = scmp.lt.s32.totalorder %s14, 4
      %p182 = pnand %p180, %p181
      %p183 = pneg %p182
      // Predicated region
      $region29: #{tpu_custom_call.1} parent=5 // pred_check
        _
      $region30: #{tpu_custom_call.1} parent=5 // pred_check_branch
        %185 = sbr.rel (%p182) target = $region32
      $region31: #{tpu_custom_call.1} parent=5 // pred_region
        %s186 = ssub.s32 %s14, 1
        // Predicated region
        $region33: #{tpu_custom_call.1} parent=31 // pred_check
          %p187 = pneg %p35
        $region34: #{tpu_custom_call.1} parent=31 // pred_check_branch
          %189 = sbr.rel (%p187) target = $region36
        $region35: #{tpu_custom_call.1} parent=31 // pred_region
          %190 = dma.done [#allocation5], 128
        $region36: #{tpu_custom_call.1} parent=31 // pred_fallthru
          _
        %s191 = sand.u32 %s19, 1
        %s192 = scalar_lea.sflag [#allocation8], %s191
        %s193 = sand.u32 %s48, 1
        %s194 = smul.addr %s193, 64
        %s195 = scalar_lea.vmem [#allocation7], %s194
        // Predicated region
        $region37: #{tpu_custom_call.1} parent=31 // pred_check
          %p196 = pneg %p61
        $region38: #{tpu_custom_call.1} parent=31 // pred_check_branch
          %198 = sbr.rel (%p196) target = $region40
        $region39: #{tpu_custom_call.1} parent=31 // pred_region
          %199 = dma.done %s192, 1024
        $region40: #{tpu_custom_call.1} parent=31 // pred_fallthru
          _
        %s200 = sand.u32 %s19, 1
        %s201 = scalar_lea.sflag [#allocation8], %s200
        %s202 = sand.u32 %s74, 1
        %s203 = smul.addr %s202, 256
        %s204 = scalar_lea.vmem [#allocation9], %s203
        // Predicated region
        $region41: #{tpu_custom_call.1} parent=31 // pred_check
          %p205 = pneg %p87
        $region42: #{tpu_custom_call.1} parent=31 // pred_check_branch
          %207 = sbr.rel (%p205) target = $region44
        $region43: #{tpu_custom_call.1} parent=31 // pred_region
          %208 = dma.done %s201, 4096
        $region44: #{tpu_custom_call.1} parent=31 // pred_fallthru
          _
        %p209 = pneg %p35
        %p210 = pneg %p32
        %s211 = sand.u32 %s19, 1
        %s212 = scalar_lea.sflag [#allocation8], %s211
        %s213 = sand.u32 %s48, 1
        %s214 = smul.addr %s213, 64
        %s215 = scalar_lea.vmem [#allocation7], %s214
        %p216 = pneg %p61
        %p217 = pneg %p58
        %s218 = sand.u32 %s19, 1
        %s219 = scalar_lea.sflag [#allocation8], %s218
        %s220 = sand.u32 %s74, 1
        %s221 = smul.addr %s220, 256
        %s222 = scalar_lea.vmem [#allocation9], %s221
        %p223 = pneg %p87
        %p224 = pneg %p84
        %p225 = pneg %p108
        %p226 = pneg %p105
        %v228 = vld [vmem:[%s195] sm:$0xf]
        %v229 = vld [vmem:[%s195 + $0x4] sm:$0xf]
        %v230 = vld [vmem:[%s195 + $0x8] sm:$0xf]
        %v231 = vld [vmem:[%s195 + $0xc] sm:$0xf]
        %v232 = vld [vmem:[%s195 + $0x10] sm:$0xf]
        %v233 = vld [vmem:[%s195 + $0x14] sm:$0xf]
        %v234 = vld [vmem:[%s195 + $0x18] sm:$0xf]
        %v235 = vld [vmem:[%s195 + $0x1c] sm:$0xf]
        %v236 = vld [vmem:[%s195 + $0x20] sm:$0xf]
        %v237 = vld [vmem:[%s195 + $0x24] sm:$0xf]
        %v238 = vld [vmem:[%s195 + $0x28] sm:$0xf]
        %v239 = vld [vmem:[%s195 + $0x2c] sm:$0xf]
        %v240 = vld [vmem:[%s195 + $0x30] sm:$0xf]
        %v241 = vld [vmem:[%s195 + $0x34] sm:$0xf]
        %v242 = vld [vmem:[%s195 + $0x38] sm:$0xf]
        %v243 = vld [vmem:[%s195 + $0x3c] sm:$0xf]
        %v244 = vld [vmem:[%s204] sm:$0xf]
        %v245 = vld [vmem:[%s204 + $0x4] sm:$0xf]
        %v246 = vld [vmem:[%s204 + $0x8] sm:$0xf]
        %v247 = vld [vmem:[%s204 + $0xc] sm:$0xf]
        %v248 = vld [vmem:[%s204 + $0x10] sm:$0xf]
        %v249 = vld [vmem:[%s204 + $0x14] sm:$0xf]
        %v250 = vld [vmem:[%s204 + $0x18] sm:$0xf]
        %v251 = vld [vmem:[%s204 + $0x1c] sm:$0xf]
        %v252 = vld [vmem:[%s204 + $0x20] sm:$0xf]
        %v253 = vld [vmem:[%s204 + $0x24] sm:$0xf]
        %v254 = vld [vmem:[%s204 + $0x28] sm:$0xf]
        %v255 = vld [vmem:[%s204 + $0x2c] sm:$0xf]
        %v256 = vld [vmem:[%s204 + $0x30] sm:$0xf]
        %v257 = vld [vmem:[%s204 + $0x34] sm:$0xf]
        %v258 = vld [vmem:[%s204 + $0x38] sm:$0xf]
        %v259 = vld [vmem:[%s204 + $0x3c] sm:$0xf]
        %v260 = vld [vmem:[%s204 + $0x40] sm:$0xf]
        %v261 = vld [vmem:[%s204 + $0x44] sm:$0xf]
        %v262 = vld [vmem:[%s204 + $0x48] sm:$0xf]
        %v263 = vld [vmem:[%s204 + $0x4c] sm:$0xf]
        %v264 = vld [vmem:[%s204 + $0x50] sm:$0xf]
        %v265 = vld [vmem:[%s204 + $0x54] sm:$0xf]
        %v266 = vld [vmem:[%s204 + $0x58] sm:$0xf]
        %v267 = vld [vmem:[%s204 + $0x5c] sm:$0xf]
        %v268 = vld [vmem:[%s204 + $0x60] sm:$0xf]
        %v269 = vld [vmem:[%s204 + $0x64] sm:$0xf]
        %v270 = vld [vmem:[%s204 + $0x68] sm:$0xf]
        %v271 = vld [vmem:[%s204 + $0x6c] sm:$0xf]
        %v272 = vld [vmem:[%s204 + $0x70] sm:$0xf]
        %v273 = vld [vmem:[%s204 + $0x74] sm:$0xf]
        %v274 = vld [vmem:[%s204 + $0x78] sm:$0xf]
        %v275 = vld [vmem:[%s204 + $0x7c] sm:$0xf]
        %v276 = vld [vmem:[%s204 + $0x80] sm:$0xf]
        %v277 = vld [vmem:[%s204 + $0x84] sm:$0xf]
        %v278 = vld [vmem:[%s204 + $0x88] sm:$0xf]
        %v279 = vld [vmem:[%s204 + $0x8c] sm:$0xf]
        %v280 = vld [vmem:[%s204 + $0x90] sm:$0xf]
        %v281 = vld [vmem:[%s204 + $0x94] sm:$0xf]
        %v282 = vld [vmem:[%s204 + $0x98] sm:$0xf]
        %v283 = vld [vmem:[%s204 + $0x9c] sm:$0xf]
        %v284 = vld [vmem:[%s204 + $0xa0] sm:$0xf]
        %v285 = vld [vmem:[%s204 + $0xa4] sm:$0xf]
        %v286 = vld [vmem:[%s204 + $0xa8] sm:$0xf]
        %v287 = vld [vmem:[%s204 + $0xac] sm:$0xf]
        %v288 = vld [vmem:[%s204 + $0xb0] sm:$0xf]
        %v289 = vld [vmem:[%s204 + $0xb4] sm:$0xf]
        %v290 = vld [vmem:[%s204 + $0xb8] sm:$0xf]
        %v291 = vld [vmem:[%s204 + $0xbc] sm:$0xf]
        %v292 = vld [vmem:[%s204 + $0xc0] sm:$0xf]
        %v293 = vld [vmem:[%s204 + $0xc4] sm:$0xf]
        %v294 = vld [vmem:[%s204 + $0xc8] sm:$0xf]
        %v295 = vld [vmem:[%s204 + $0xcc] sm:$0xf]
        %v296 = vld [vmem:[%s204 + $0xd0] sm:$0xf]
        %v297 = vld [vmem:[%s204 + $0xd4] sm:$0xf]
        %v298 = vld [vmem:[%s204 + $0xd8] sm:$0xf]
        %v299 = vld [vmem:[%s204 + $0xdc] sm:$0xf]
        %v300 = vld [vmem:[%s204 + $0xe0] sm:$0xf]
        %v301 = vld [vmem:[%s204 + $0xe4] sm:$0xf]
        %v302 = vld [vmem:[%s204 + $0xe8] sm:$0xf]
        %v303 = vld [vmem:[%s204 + $0xec] sm:$0xf]
        %v304 = vld [vmem:[%s204 + $0xf0] sm:$0xf]
        %v305 = vld [vmem:[%s204 + $0xf4] sm:$0xf]
        %v306 = vld [vmem:[%s204 + $0xf8] sm:$0xf]
        %v307 = vld [vmem:[%s204 + $0xfc] sm:$0xf]
        %p308 = scmp.eq.s32.totalorder %s19, 0
        // Predicated region
        $region45: #{tpu_custom_call.1} parent=31 // pred_check
          %p309 = pneg %p308
        $region46: #{tpu_custom_call.1} parent=31 // pred_check_branch
          %311 = sbr.rel (%p309) target = $region48
        $region47: #{tpu_custom_call.1} parent=31 // pred_region
          %v312 = vunpack.c.l.bf16 %v244
          %v313 = vunpack.c.l.bf16 %v245
          %v314 = vunpack.c.l.bf16 %v246
          %v315 = vunpack.c.l.bf16 %v247
          %v316 = vunpack.c.l.bf16 %v248
          %v317 = vunpack.c.l.bf16 %v249
          %v318 = vunpack.c.l.bf16 %v250
          %v319 = vunpack.c.l.bf16 %v251
          %v320 = vunpack.c.l.bf16 %v252
          %v321 = vunpack.c.l.bf16 %v253
          %v322 = vunpack.c.l.bf16 %v254
          %v323 = vunpack.c.l.bf16 %v255
          %v324 = vunpack.c.l.bf16 %v256
          %v325 = vunpack.c.l.bf16 %v257
          %v326 = vunpack.c.l.bf16 %v258
          %v327 = vunpack.c.l.bf16 %v259
          %v328 = vunpack.c.l.bf16 %v260
          %v329 = vunpack.c.l.bf16 %v261
          %v330 = vunpack.c.l.bf16 %v262
          %v331 = vunpack.c.l.bf16 %v263
          %v332 = vunpack.c.l.bf16 %v264
          %v333 = vunpack.c.l.bf16 %v265
          %v334 = vunpack.c.l.bf16 %v266
          %v335 = vunpack.c.l.bf16 %v267
          %v336 = vunpack.c.l.bf16 %v268
          %v337 = vunpack.c.l.bf16 %v269
          %v338 = vunpack.c.l.bf16 %v270
          %v339 = vunpack.c.l.bf16 %v271
          %v340 = vunpack.c.l.bf16 %v272
          %v341 = vunpack.c.l.bf16 %v273
          %v342 = vunpack.c.l.bf16 %v274
          %v343 = vunpack.c.l.bf16 %v275
          %v344 = vunpack.c.l.bf16 %v276
          %v345 = vunpack.c.l.bf16 %v277
          %v346 = vunpack.c.l.bf16 %v278
          %v347 = vunpack.c.l.bf16 %v279
          %v348 = vunpack.c.l.bf16 %v280
          %v349 = vunpack.c.l.bf16 %v281
          %v350 = vunpack.c.l.bf16 %v282
          %v351 = vunpack.c.l.bf16 %v283
          %v352 = vunpack.c.l.bf16 %v284
          %v353 = vunpack.c.l.bf16 %v285
          %v354 = vunpack.c.l.bf16 %v286
          %v355 = vunpack.c.l.bf16 %v287
          %v356 = vunpack.c.l.bf16 %v288
          %v357 = vunpack.c.l.bf16 %v289
          %v358 = vunpack.c.l.bf16 %v290
          %v359 = vunpack.c.l.bf16 %v291
          %v360 = vunpack.c.l.bf16 %v292
          %v361 = vunpack.c.l.bf16 %v293
          %v362 = vunpack.c.l.bf16 %v294
          %v363 = vunpack.c.l.bf16 %v295
          %v364 = vunpack.c.l.bf16 %v296
          %v365 = vunpack.c.l.bf16 %v297
          %v366 = vunpack.c.l.bf16 %v298
          %v367 = vunpack.c.l.bf16 %v299
          %v368 = vunpack.c.l.bf16 %v300
          %v369 = vunpack.c.l.bf16 %v301
          %v370 = vunpack.c.l.bf16 %v302
          %v371 = vunpack.c.l.bf16 %v303
          %v372 = vunpack.c.l.bf16 %v304
          %v373 = vunpack.c.l.bf16 %v305
          %v374 = vunpack.c.l.bf16 %v306
          %v375 = vunpack.c.l.bf16 %v307
          %v376 = vadd.f32 %v312, %v328
          %v377 = vadd.f32 %v376, %v344
          %v378 = vadd.f32 %v377, %v360
          %v379 = vadd.f32 %v313, %v329
          %v380 = vadd.f32 %v379, %v345
          %v381 = vadd.f32 %v380, %v361
          %v382 = vadd.f32 %v314, %v330
          %v383 = vadd.f32 %v382, %v346
          %v384 = vadd.f32 %v383, %v362
          %v385 = vadd.f32 %v315, %v331
          %v386 = vadd.f32 %v385, %v347
          %v387 = vadd.f32 %v386, %v363
          %v388 = vadd.f32 %v316, %v332
          %v389 = vadd.f32 %v388, %v348
          %v390 = vadd.f32 %v389, %v364
          %v391 = vadd.f32 %v317, %v333
          %v392 = vadd.f32 %v391, %v349
          %v393 = vadd.f32 %v392, %v365
          %v394 = vadd.f32 %v318, %v334
          %v395 = vadd.f32 %v394, %v350
          %v396 = vadd.f32 %v395, %v366
          %v397 = vadd.f32 %v319, %v335
          %v398 = vadd.f32 %v397, %v351
          %v399 = vadd.f32 %v398, %v367
          %v400 = vadd.f32 %v320, %v336
          %v401 = vadd.f32 %v400, %v352
          %v402 = vadd.f32 %v401, %v368
          %v403 = vadd.f32 %v321, %v337
          %v404 = vadd.f32 %v403, %v353
          %v405 = vadd.f32 %v404, %v369
          %v406 = vadd.f32 %v322, %v338
          %v407 = vadd.f32 %v406, %v354
          %v408 = vadd.f32 %v407, %v370
          %v409 = vadd.f32 %v323, %v339
          %v410 = vadd.f32 %v409, %v355
          %v411 = vadd.f32 %v410, %v371
          %v412 = vadd.f32 %v324, %v340
          %v413 = vadd.f32 %v412, %v356
          %v414 = vadd.f32 %v413, %v372
          %v415 = vadd.f32 %v325, %v341
          %v416 = vadd.f32 %v415, %v357
          %v417 = vadd.f32 %v416, %v373
          %v418 = vadd.f32 %v326, %v342
          %v419 = vadd.f32 %v418, %v358
          %v420 = vadd.f32 %v419, %v374
          %v421 = vadd.f32 %v327, %v343
          %v422 = vadd.f32 %v421, %v359
          %v423 = vadd.f32 %v422, %v375
          %v424 = vmul.f32 %v378, 0.25
          %v425 = vmul.f32 %v381, 0.25
          %v426 = vmul.f32 %v384, 0.25
          %v427 = vmul.f32 %v387, 0.25
          %v428 = vmul.f32 %v390, 0.25
          %v429 = vmul.f32 %v393, 0.25
          %v430 = vmul.f32 %v396, 0.25
          %v431 = vmul.f32 %v399, 0.25
          %v432 = vmul.f32 %v402, 0.25
          %v433 = vmul.f32 %v405, 0.25
          %v434 = vmul.f32 %v408, 0.25
          %v435 = vmul.f32 %v411, 0.25
          %v436 = vmul.f32 %v414, 0.25
          %v437 = vmul.f32 %v417, 0.25
          %v438 = vmul.f32 %v420, 0.25
          %v439 = vmul.f32 %v423, 0.25
          %v440 = vld [vmem:[#allocation4] sm:$0xff]
          %v441 = vpack.c.bf16 %v440, %v440
          %v458 = vunpack.c.l.b16 %v228
          %v459 = vunpack.c.l.b16 %v229
          %v460 = vunpack.c.l.b16 %v230
          %v461 = vunpack.c.l.b16 %v231
          %v462 = vunpack.c.l.b16 %v232
          %v463 = vunpack.c.l.b16 %v233
          %v464 = vunpack.c.l.b16 %v234
          %v465 = vunpack.c.l.b16 %v235
          %v466 = vunpack.c.l.b16 %v236
          %v467 = vunpack.c.l.b16 %v237
          %v468 = vunpack.c.l.b16 %v238
          %v469 = vunpack.c.l.b16 %v239
          %v470 = vunpack.c.l.b16 %v240
          %v471 = vunpack.c.l.b16 %v241
          %v472 = vunpack.c.l.b16 %v242
          %v473 = vunpack.c.l.b16 %v243
          %v474 = vpack.c.b16 %v459, %v458
          %v475 = vpack.c.b16 %v461, %v460
          %v476 = vpack.c.b16 %v463, %v462
          %v477 = vpack.c.b16 %v465, %v464
          %v478 = vpack.c.b16 %v467, %v466
          %v479 = vpack.c.b16 %v469, %v468
          %v480 = vpack.c.b16 %v471, %v470
          %v481 = vpack.c.b16 %v473, %v472
          %490 = vmatprep.subr.bf16.mxu0 0
          %491 = vmatpush1.bf16.xpose.msra.mxu0 %v474
          %492 = vmatprep.subr.bf16.mxu0 0
          %493 = vmatpush1.bf16.xpose.msra.mxu0 %v475
          %494 = vmatprep.subr.bf16.mxu0 0
          %495 = vmatpush1.bf16.xpose.msra.mxu0 %v476
          %496 = vmatprep.subr.bf16.mxu0 0
          %497 = vmatpush1.bf16.xpose.msra.mxu0 %v477
          %498 = vmatprep.subr.bf16.mxu0 0
          %499 = vmatpush1.bf16.xpose.msra.mxu0 %v478
          %500 = vmatprep.subr.bf16.mxu0 0
          %501 = vmatpush1.bf16.xpose.msra.mxu0 %v479
          %502 = vmatprep.subr.bf16.mxu0 0
          %503 = vmatpush1.bf16.xpose.msra.mxu0 %v480
          %504 = vmatprep.subr.bf16.mxu0 0
          %505 = vmatpush1.bf16.xpose.msra.mxu0 %v481
          %506 = vmatprep.subr.bf16.mxu0 0
          %507 = vmatpush1.bf16.xpose.msra.mxu0 0
          %508 = vmatprep.subr.bf16.mxu0 0
          %509 = vmatpush1.bf16.xpose.msra.mxu0 0
          %510 = vmatprep.subr.bf16.mxu0 0
          %511 = vmatpush1.bf16.xpose.msra.mxu0 0
          %512 = vmatprep.subr.bf16.mxu0 0
          %513 = vmatpush1.bf16.xpose.msra.mxu0 0
          %514 = vmatprep.subr.bf16.mxu0 0
          %515 = vmatpush1.bf16.xpose.msra.mxu0 0
          %516 = vmatprep.subr.bf16.mxu0 0
          %517 = vmatpush1.bf16.xpose.msra.mxu0 0
          %518 = vmatprep.subr.bf16.mxu0 0
          %519 = vmatpush1.bf16.xpose.msra.mxu0 0
          %520 = vmatprep.subr.bf16.mxu0 0
          %521 = vmatpush1.bf16.xpose.msra.mxu0 0
          %522 = vmatprep.mubr.bf16.mxu0 0
          %523 = vmatmul.mubr.bf16.gmra.mrb[0].mxu0 %v441
          %v524 = vpop.f32.mrb[0].mxu0
          %v525 = vadd.f32 0.0, %v524
          %v526 = vpop.f32.mrb[0].mxu0
          %v527 = vpop.f32.mrb[0].mxu0
          %v528 = vpop.f32.mrb[0].mxu0
          %529 = vdwg.mxu0
          %v530 = vpack.c.bf16 %v525, %v525
          %v531 = vpack.c.bf16 %v425, %v424
          %v532 = vpack.c.bf16 %v427, %v426
          %v533 = vpack.c.bf16 %v429, %v428
          %v534 = vpack.c.bf16 %v431, %v430
          %v535 = vpack.c.bf16 %v433, %v432
          %v536 = vpack.c.bf16 %v435, %v434
          %v537 = vpack.c.bf16 %v437, %v436
          %v538 = vpack.c.bf16 %v439, %v438
          %539 = vmatprep.subr.bf16.mxu0 0
          %540 = vmatpush1.bf16.msra.mxu0 %v531
          %541 = vmatprep.subr.bf16.mxu0 0
          %542 = vmatpush1.bf16.msra.mxu0 %v532
          %543 = vmatprep.subr.bf16.mxu0 0
          %544 = vmatpush1.bf16.msra.mxu0 %v533
          %545 = vmatprep.subr.bf16.mxu0 0
          %546 = vmatpush1.bf16.msra.mxu0 %v534
          %547 = vmatprep.subr.bf16.mxu0 0
          %548 = vmatpush1.bf16.msra.mxu0 %v535
          %549 = vmatprep.subr.bf16.mxu0 0
          %550 = vmatpush1.bf16.msra.mxu0 %v536
          %551 = vmatprep.subr.bf16.mxu0 0
          %552 = vmatpush1.bf16.msra.mxu0 %v537
          %553 = vmatprep.subr.bf16.mxu0 0
          %554 = vmatpush1.bf16.msra.mxu0 %v538
          %555 = vmatprep.subr.bf16.mxu0 0
          %556 = vmatpush1.bf16.msra.mxu0 0
          %557 = vmatprep.subr.bf16.mxu0 0
          %558 = vmatpush1.bf16.msra.mxu0 0
          %559 = vmatprep.subr.bf16.mxu0 0
          %560 = vmatpush1.bf16.msra.mxu0 0
          %561 = vmatprep.subr.bf16.mxu0 0
          %562 = vmatpush1.bf16.msra.mxu0 0
          %563 = vmatprep.subr.bf16.mxu0 0
          %564 = vmatpush1.bf16.msra.mxu0 0
          %565 = vmatprep.subr.bf16.mxu0 0
          %566 = vmatpush1.bf16.msra.mxu0 0
          %567 = vmatprep.subr.bf16.mxu0 0
          %568 = vmatpush1.bf16.msra.mxu0 0
          %569 = vmatprep.subr.bf16.mxu0 0
          %570 = vmatpush1.bf16.msra.mxu0 0
          %571 = vmatprep.mubr.bf16.mxu0 0
          %572 = vmatmul.mubr.bf16.gmra.mrb[0].mxu0 %v530
          %v573 = vpop.f32.mrb[0].mxu0
          %v574 = vadd.f32 0.0, %v573
          %v575 = vpop.f32.mrb[0].mxu0
          %v576 = vpop.f32.mrb[0].mxu0
          %v577 = vpop.f32.mrb[0].mxu0
          %578 = vdwg.mxu0
          %579 = vst [vmem:[#allocation2] sm:$0xff] %v574
        $region48: #{tpu_custom_call.1} parent=31 // pred_fallthru
          _
        %p580 = scmp.gt.s32.totalorder %s19, 0
        // Predicated region
        $region49: #{tpu_custom_call.1} parent=31 // pred_check
          %p581 = pneg %p580
        $region50: #{tpu_custom_call.1} parent=31 // pred_check_branch
          %583 = sbr.rel (%p581) target = $region52
        $region51: #{tpu_custom_call.1} parent=31 // pred_region
          %v584 = vld [vmem:[#allocation3] sm:$0xff]
          %v585 = vld [vmem:[#allocation3 + $0x8] sm:$0xff]
          %v586 = vld [vmem:[#allocation3 + $0x10] sm:$0xff]
          %v587 = vld [vmem:[#allocation3 + $0x18] sm:$0xff]
          %v588 = vld [vmem:[#allocation3 + $0x20] sm:$0xff]
          %v589 = vld [vmem:[#allocation3 + $0x28] sm:$0xff]
          %v590 = vld [vmem:[#allocation3 + $0x30] sm:$0xff]
          %v591 = vld [vmem:[#allocation3 + $0x38] sm:$0xff]
          %v592 = vld [vmem:[#allocation3 + $0x40] sm:$0xff]
          %v593 = vld [vmem:[#allocation3 + $0x48] sm:$0xff]
          %v594 = vld [vmem:[#allocation3 + $0x50] sm:$0xff]
          %v595 = vld [vmem:[#allocation3 + $0x58] sm:$0xff]
          %v596 = vld [vmem:[#allocation3 + $0x60] sm:$0xff]
          %v597 = vld [vmem:[#allocation3 + $0x68] sm:$0xff]
          %v598 = vld [vmem:[#allocation3 + $0x70] sm:$0xff]
          %v599 = vld [vmem:[#allocation3 + $0x78] sm:$0xff]
          %v600 = vld [vmem:[#allocation3 + $0x80] sm:$0xff]
          %v601 = vld [vmem:[#allocation3 + $0x88] sm:$0xff]
          %v602 = vld [vmem:[#allocation3 + $0x90] sm:$0xff]
          %v603 = vld [vmem:[#allocation3 + $0x98] sm:$0xff]
          %v604 = vld [vmem:[#allocation3 + $0xa0] sm:$0xff]
          %v605 = vld [vmem:[#allocation3 + $0xa8] sm:$0xff]
          %v606 = vld [vmem:[#allocation3 + $0xb0] sm:$0xff]
          %v607 = vld [vmem:[#allocation3 + $0xb8] sm:$0xff]
          %v608 = vld [vmem:[#allocation3 + $0xc0] sm:$0xff]
          %v609 = vld [vmem:[#allocation3 + $0xc8] sm:$0xff]
          %v610 = vld [vmem:[#allocation3 + $0xd0] sm:$0xff]
          %v611 = vld [vmem:[#allocation3 + $0xd8] sm:$0xff]
          %v612 = vld [vmem:[#allocation3 + $0xe0] sm:$0xff]
          %v613 = vld [vmem:[#allocation3 + $0xe8] sm:$0xff]
          %v614 = vld [vmem:[#allocation3 + $0xf0] sm:$0xff]
          %v615 = vld [vmem:[#allocation3 + $0xf8] sm:$0xff]
          %v632 = vunpack.c.l.b16 %v228
          %v633 = vunpack.c.l.b16 %v229
          %v634 = vunpack.c.l.b16 %v230
          %v635 = vunpack.c.l.b16 %v231
          %v636 = vunpack.c.l.b16 %v232
          %v637 = vunpack.c.l.b16 %v233
          %v638 = vunpack.c.l.b16 %v234
          %v639 = vunpack.c.l.b16 %v235
          %v640 = vunpack.c.l.b16 %v236
          %v641 = vunpack.c.l.b16 %v237
          %v642 = vunpack.c.l.b16 %v238
          %v643 = vunpack.c.l.b16 %v239
          %v644 = vunpack.c.l.b16 %v240
          %v645 = vunpack.c.l.b16 %v241
          %v646 = vunpack.c.l.b16 %v242
          %v647 = vunpack.c.l.b16 %v243
          %v648 = vpack.c.b16 %v633, %v632
          %v649 = vpack.c.b16 %v635, %v634
          %v650 = vpack.c.b16 %v637, %v636
          %v651 = vpack.c.b16 %v639, %v638
          %v652 = vpack.c.b16 %v641, %v640
          %v653 = vpack.c.b16 %v643, %v642
          %v654 = vpack.c.b16 %v645, %v644
          %v655 = vpack.c.b16 %v647, %v646
          %664 = vmatprep.subr.bf16.mxu0 0
          %665 = vmatpush1.bf16.msra.mxu0 %v584
          %666 = vmatprep.subr.bf16.mxu0 0
          %667 = vmatpush1.bf16.msra.mxu0 %v585
          %668 = vmatprep.subr.bf16.mxu0 0
          %669 = vmatpush1.bf16.msra.mxu0 %v586
          %670 = vmatprep.subr.bf16.mxu0 0
          %671 = vmatpush1.bf16.msra.mxu0 %v587
          %672 = vmatprep.subr.bf16.mxu0 0
          %673 = vmatpush1.bf16.msra.mxu0 %v588
          %674 = vmatprep.subr.bf16.mxu0 0
          %675 = vmatpush1.bf16.msra.mxu0 %v589
          %676 = vmatprep.subr.bf16.mxu0 0
          %677 = vmatpush1.bf16.msra.mxu0 %v590
          %678 = vmatprep.subr.bf16.mxu0 0
          %679 = vmatpush1.bf16.msra.mxu0 %v591
          %680 = vmatprep.subr.bf16.mxu0 0
          %681 = vmatpush1.bf16.msra.mxu0 0
          %682 = vmatprep.subr.bf16.mxu0 0
          %683 = vmatpush1.bf16.msra.mxu0 0
          %684 = vmatprep.subr.bf16.mxu0 0
          %685 = vmatpush1.bf16.msra.mxu0 0
          %686 = vmatprep.subr.bf16.mxu0 0
          %687 = vmatpush1.bf16.msra.mxu0 0
          %688 = vmatprep.subr.bf16.mxu0 0
          %689 = vmatpush1.bf16.msra.mxu0 0
          %690 = vmatprep.subr.bf16.mxu0 0
          %691 = vmatpush1.bf16.msra.mxu0 0
          %692 = vmatprep.subr.bf16.mxu0 0
          %693 = vmatpush1.bf16.msra.mxu0 0
          %694 = vmatprep.subr.bf16.mxu0 0
          %695 = vmatpush1.bf16.msra.mxu0 0
          %696 = vmatprep.mubr.bf16.mxu0 0
          %697 = vmatmul.mubr.bf16.gmra.mrb[0].mxu0 %v648
          %v698 = vpop.f32.mrb[0].mxu0
          %v699 = vadd.f32 0.0, %v698
          %v700 = vpop.f32.mrb[0].mxu0
          %v701 = vpop.f32.mrb[0].mxu0
          %v702 = vadd.f32 0.0, %v701
          %v703 = vpop.f32.mrb[0].mxu0
          %704 = vmatprep.mubr.bf16.mxu0 0
          %705 = vmatmul.mubr.bf16.gmra.mrb[0].mxu0 %v649
          %v706 = vpop.f32.mrb[0].mxu0
          %v707 = vadd.f32 0.0, %v706
          %v708 = vpop.f32.mrb[0].mxu0
          %v709 = vpop.f32.mrb[0].mxu0
          %v710 = vadd.f32 0.0, %v709
          %v711 = vpop.f32.mrb[0].mxu0
          %712 = vmatprep.mubr.bf16.mxu0 0
          %713 = vmatmul.mubr.bf16.gmra.mrb[0].mxu0 %v650
          %v714 = vpop.f32.mrb[0].mxu0
          %v715 = vadd.f32 0.0, %v714
          %v716 = vpop.f32.mrb[0].mxu0
          %v717 = vpop.f32.mrb[0].mxu0
          %v718 = vadd.f32 0.0, %v717
          %v719 = vpop.f32.mrb[0].mxu0
          %720 = vmatprep.mubr.bf16.mxu0 0
          %721 = vmatmul.mubr.bf16.gmra.mrb[0].mxu0 %v651
          %v722 = vpop.f32.mrb[0].mxu0
          %v723 = vadd.f32 0.0, %v722
          %v724 = vpop.f32.mrb[0].mxu0
          %v725 = vpop.f32.mrb[0].mxu0
          %v726 = vadd.f32 0.0, %v725
          %v727 = vpop.f32.mrb[0].mxu0
          %728 = vmatprep.mubr.bf16.mxu0 0
          %729 = vmatmul.mubr.bf16.gmra.mrb[0].mxu0 %v652
          %v730 = vpop.f32.mrb[0].mxu0
          %v731 = vadd.f32 0.0, %v730
          %v732 = vpop.f32.mrb[0].mxu0
          %v733 = vpop.f32.mrb[0].mxu0
          %v734 = vadd.f32 0.0, %v733
          %v735 = vpop.f32.mrb[0].mxu0
          %736 = vmatprep.mubr.bf16.mxu0 0
          %737 = vmatmul.mubr.bf16.gmra.mrb[0].mxu0 %v653
          %v738 = vpop.f32.mrb[0].mxu0
          %v739 = vadd.f32 0.0, %v738
          %v740 = vpop.f32.mrb[0].mxu0
          %v741 = vpop.f32.mrb[0].mxu0
          %v742 = vadd.f32 0.0, %v741
          %v743 = vpop.f32.mrb[0].mxu0
          %744 = vmatprep.mubr.bf16.mxu0 0
          %745 = vmatmul.mubr.bf16.gmra.mrb[0].mxu0 %v654
          %v746 = vpop.f32.mrb[0].mxu0
          %v747 = vadd.f32 0.0, %v746
          %v748 = vpop.f32.mrb[0].mxu0
          %v749 = vpop.f32.mrb[0].mxu0
          %v750 = vadd.f32 0.0, %v749
          %v751 = vpop.f32.mrb[0].mxu0
          %752 = vmatprep.mubr.bf16.mxu0 0
          %753 = vmatmul.mubr.bf16.gmra.mrb[0].mxu0 %v655
          %v754 = vpop.f32.mrb[0].mxu0
          %v755 = vadd.f32 0.0, %v754
          %v756 = vpop.f32.mrb[0].mxu0
          %v757 = vpop.f32.mrb[0].mxu0
          %v758 = vadd.f32 0.0, %v757
          %v759 = vpop.f32.mrb[0].mxu0
          %760 = vdwg.mxu0
          %761 = vmatprep.subr.bf16.mxu0 0
          %762 = vmatpush1.bf16.msra.mxu0 %v592
          %763 = vmatprep.subr.bf16.mxu0 0
          %764 = vmatpush1.bf16.msra.mxu0 %v593
          %765 = vmatprep.subr.bf16.mxu0 0
          %766 = vmatpush1.bf16.msra.mxu0 %v594
          %767 = vmatprep.subr.bf16.mxu0 0
          %768 = vmatpush1.bf16.msra.mxu0 %v595
          %769 = vmatprep.subr.bf16.mxu0 0
          %770 = vmatpush1.bf16.msra.mxu0 %v596
          %771 = vmatprep.subr.bf16.mxu0 0
          %772 = vmatpush1.bf16.msra.mxu0 %v597
          %773 = vmatprep.subr.bf16.mxu0 0
          %774 = vmatpush1.bf16.msra.mxu0 %v598
          %775 = vmatprep.subr.bf16.mxu0 0
          %776 = vmatpush1.bf16.msra.mxu0 %v599
          %777 = vmatprep.subr.bf16.mxu0 0
          %778 = vmatpush1.bf16.msra.mxu0 0
          %779 = vmatprep.subr.bf16.mxu0 0
          %780 = vmatpush1.bf16.msra.mxu0 0
          %781 = vmatprep.subr.bf16.mxu0 0
          %782 = vmatpush1.bf16.msra.mxu0 0
          %783 = vmatprep.subr.bf16.mxu0 0
          %784 = vmatpush1.bf16.msra.mxu0 0
          %785 = vmatprep.subr.bf16.mxu0 0
          %786 = vmatpush1.bf16.msra.mxu0 0
          %787 = vmatprep.subr.bf16.mxu0 0
          %788 = vmatpush1.bf16.msra.mxu0 0
          %789 = vmatprep.subr.bf16.mxu0 0
          %790 = vmatpush1.bf16.msra.mxu0 0
          %791 = vmatprep.subr.bf16.mxu0 0
          %792 = vmatpush1.bf16.msra.mxu0 0
          %793 = vmatprep.mubr.bf16.mxu0 0
          %794 = vmatmul.mubr.bf16.gmra.mrb[0].mxu0 %v648
          %v795 = vpop.f32.mrb[0].mxu0
          %v796 = vadd.f32 0.0, %v795
          %v797 = vpop.f32.mrb[0].mxu0
          %v798 = vpop.f32.mrb[0].mxu0
          %v799 = vadd.f32 0.0, %v798
          %v800 = vpop.f32.mrb[0].mxu0
          %801 = vmatprep.mubr.bf16.mxu0 0
          %802 = vmatmul.mubr.bf16.gmra.mrb[0].mxu0 %v649
          %v803 = vpop.f32.mrb[0].mxu0
          %v804 = vadd.f32 0.0, %v803
          %v805 = vpop.f32.mrb[0].mxu0
          %v806 = vpop.f32.mrb[0].mxu0
          %v807 = vadd.f32 0.0, %v806
          %v808 = vpop.f32.mrb[0].mxu0
          %809 = vmatprep.mubr.bf16.mxu0 0
          %810 = vmatmul.mubr.bf16.gmra.mrb[0].mxu0 %v650
          %v811 = vpop.f32.mrb[0].mxu0
          %v812 = vadd.f32 0.0, %v811
          %v813 = vpop.f32.mrb[0].mxu0
          %v814 = vpop.f32.mrb[0].mxu0
          %v815 = vadd.f32 0.0, %v814
          %v816 = vpop.f32.mrb[0].mxu0
          %817 = vmatprep.mubr.bf16.mxu0 0
          %818 = vmatmul.mubr.bf16.gmra.mrb[0].mxu0 %v651
          %v819 = vpop.f32.mrb[0].mxu0
          %v820 = vadd.f32 0.0, %v819
          %v821 = vpop.f32.mrb[0].mxu0
          %v822 = vpop.f32.mrb[0].mxu0
          %v823 = vadd.f32 0.0, %v822
          %v824 = vpop.f32.mrb[0].mxu0
          %825 = vmatprep.mubr.bf16.mxu0 0
          %826 = vmatmul.mubr.bf16.gmra.mrb[0].mxu0 %v652
          %v827 = vpop.f32.mrb[0].mxu0
          %v828 = vadd.f32 0.0, %v827
          %v829 = vpop.f32.mrb[0].mxu0
          %v830 = vpop.f32.mrb[0].mxu0
          %v831 = vadd.f32 0.0, %v830
          %v832 = vpop.f32.mrb[0].mxu0
          %833 = vmatprep.mubr.bf16.mxu0 0
          %834 = vmatmul.mubr.bf16.gmra.mrb[0].mxu0 %v653
          %v835 = vpop.f32.mrb[0].mxu0
          %v836 = vadd.f32 0.0, %v835
          %v837 = vpop.f32.mrb[0].mxu0
          %v838 = vpop.f32.mrb[0].mxu0
          %v839 = vadd.f32 0.0, %v838
          %v840 = vpop.f32.mrb[0].mxu0
          %841 = vmatprep.mubr.bf16.mxu0 0
          %842 = vmatmul.mubr.bf16.gmra.mrb[0].mxu0 %v654
          %v843 = vpop.f32.mrb[0].mxu0
          %v844 = vadd.f32 0.0, %v843
          %v845 = vpop.f32.mrb[0].mxu0
          %v846 = vpop.f32.mrb[0].mxu0
          %v847 = vadd.f32 0.0, %v846
          %v848 = vpop.f32.mrb[0].mxu0
          %849 = vmatprep.mubr.bf16.mxu0 0
          %850 = vmatmul.mubr.bf16.gmra.mrb[0].mxu0 %v655
          %v851 = vpop.f32.mrb[0].mxu0
          %v852 = vadd.f32 0.0, %v851
          %v853 = vpop.f32.mrb[0].mxu0
          %v854 = vpop.f32.mrb[0].mxu0
          %v855 = vadd.f32 0.0, %v854
          %v856 = vpop.f32.mrb[0].mxu0
          %857 = vdwg.mxu0
          %858 = vmatprep.subr.bf16.mxu0 0
          %859 = vmatpush1.bf16.msra.mxu0 %v600
          %860 = vmatprep.subr.bf16.mxu0 0
          %861 = vmatpush1.bf16.msra.mxu0 %v601
          %862 = vmatprep.subr.bf16.mxu0 0
          %863 = vmatpush1.bf16.msra.mxu0 %v602
          %864 = vmatprep.subr.bf16.mxu0 0
          %865 = vmatpush1.bf16.msra.mxu0 %v603
          %866 = vmatprep.subr.bf16.mxu0 0
          %867 = vmatpush1.bf16.msra.mxu0 %v604
          %868 = vmatprep.subr.bf16.mxu0 0
          %869 = vmatpush1.bf16.msra.mxu0 %v605
          %870 = vmatprep.subr.bf16.mxu0 0
          %871 = vmatpush1.bf16.msra.mxu0 %v606
          %872 = vmatprep.subr.bf16.mxu0 0
          %873 = vmatpush1.bf16.msra.mxu0 %v607
          %874 = vmatprep.subr.bf16.mxu0 0
          %875 = vmatpush1.bf16.msra.mxu0 0
          %876 = vmatprep.subr.bf16.mxu0 0
          %877 = vmatpush1.bf16.msra.mxu0 0
          %878 = vmatprep.subr.bf16.mxu0 0
          %879 = vmatpush1.bf16.msra.mxu0 0
          %880 = vmatprep.subr.bf16.mxu0 0
          %881 = vmatpush1.bf16.msra.mxu0 0
          %882 = vmatprep.subr.bf16.mxu0 0
          %883 = vmatpush1.bf16.msra.mxu0 0
          %884 = vmatprep.subr.bf16.mxu0 0
          %885 = vmatpush1.bf16.msra.mxu0 0
          %886 = vmatprep.subr.bf16.mxu0 0
          %887 = vmatpush1.bf16.msra.mxu0 0
          %888 = vmatprep.subr.bf16.mxu0 0
          %889 = vmatpush1.bf16.msra.mxu0 0
          %890 = vmatprep.mubr.bf16.mxu0 0
          %891 = vmatmul.mubr.bf16.gmra.mrb[0].mxu0 %v648
          %v892 = vpop.f32.mrb[0].mxu0
          %v893 = vadd.f32 0.0, %v892
          %v894 = vpop.f32.mrb[0].mxu0
          %v895 = vpop.f32.mrb[0].mxu0
          %v896 = vadd.f32 0.0, %v895
          %v897 = vpop.f32.mrb[0].mxu0
          %898 = vmatprep.mubr.bf16.mxu0 0
          %899 = vmatmul.mubr.bf16.gmra.mrb[0].mxu0 %v649
          %v900 = vpop.f32.mrb[0].mxu0
          %v901 = vadd.f32 0.0, %v900
          %v902 = vpop.f32.mrb[0].mxu0
          %v903 = vpop.f32.mrb[0].mxu0
          %v904 = vadd.f32 0.0, %v903
          %v905 = vpop.f32.mrb[0].mxu0
          %906 = vmatprep.mubr.bf16.mxu0 0
          %907 = vmatmul.mubr.bf16.gmra.mrb[0].mxu0 %v650
          %v908 = vpop.f32.mrb[0].mxu0
          %v909 = vadd.f32 0.0, %v908
          %v910 = vpop.f32.mrb[0].mxu0
          %v911 = vpop.f32.mrb[0].mxu0
          %v912 = vadd.f32 0.0, %v911
          %v913 = vpop.f32.mrb[0].mxu0
          %914 = vmatprep.mubr.bf16.mxu0 0
          %915 = vmatmul.mubr.bf16.gmra.mrb[0].mxu0 %v651
          %v916 = vpop.f32.mrb[0].mxu0
          %v917 = vadd.f32 0.0, %v916
          %v918 = vpop.f32.mrb[0].mxu0
          %v919 = vpop.f32.mrb[0].mxu0
          %v920 = vadd.f32 0.0, %v919
          %v921 = vpop.f32.mrb[0].mxu0
          %922 = vmatprep.mubr.bf16.mxu0 0
          %923 = vmatmul.mubr.bf16.gmra.mrb[0].mxu0 %v652
          %v924 = vpop.f32.mrb[0].mxu0
          %v925 = vadd.f32 0.0, %v924
          %v926 = vpop.f32.mrb[0].mxu0
          %v927 = vpop.f32.mrb[0].mxu0
          %v928 = vadd.f32 0.0, %v927
          %v929 = vpop.f32.mrb[0].mxu0
          %930 = vmatprep.mubr.bf16.mxu0 0
          %931 = vmatmul.mubr.bf16.gmra.mrb[0].mxu0 %v653
          %v932 = vpop.f32.mrb[0].mxu0
          %v933 = vadd.f32 0.0, %v932
          %v934 = vpop.f32.mrb[0].mxu0
          %v935 = vpop.f32.mrb[0].mxu0
          %v936 = vadd.f32 0.0, %v935
          %v937 = vpop.f32.mrb[0].mxu0
          %938 = vmatprep.mubr.bf16.mxu0 0
          %939 = vmatmul.mubr.bf16.gmra.mrb[0].mxu0 %v654
          %v940 = vpop.f32.mrb[0].mxu0
          %v941 = vadd.f32 0.0, %v940
          %v942 = vpop.f32.mrb[0].mxu0
          %v943 = vpop.f32.mrb[0].mxu0
          %v944 = vadd.f32 0.0, %v943
          %v945 = vpop.f32.mrb[0].mxu0
          %946 = vmatprep.mubr.bf16.mxu0 0
          %947 = vmatmul.mubr.bf16.gmra.mrb[0].mxu0 %v655
          %v948 = vpop.f32.mrb[0].mxu0
          %v949 = vadd.f32 0.0, %v948
          %v950 = vpop.f32.mrb[0].mxu0
          %v951 = vpop.f32.mrb[0].mxu0
          %v952 = vadd.f32 0.0, %v951
          %v953 = vpop.f32.mrb[0].mxu0
          %954 = vdwg.mxu0
          %955 = vmatprep.subr.bf16.mxu0 0
          %956 = vmatpush1.bf16.msra.mxu0 %v608
          %957 = vmatprep.subr.bf16.mxu0 0
          %958 = vmatpush1.bf16.msra.mxu0 %v609
          %959 = vmatprep.subr.bf16.mxu0 0
          %960 = vmatpush1.bf16.msra.mxu0 %v610
          %961 = vmatprep.subr.bf16.mxu0 0
          %962 = vmatpush1.bf16.msra.mxu0 %v611
          %963 = vmatprep.subr.bf16.mxu0 0
          %964 = vmatpush1.bf16.msra.mxu0 %v612
          %965 = vmatprep.subr.bf16.mxu0 0
          %966 = vmatpush1.bf16.msra.mxu0 %v613
          %967 = vmatprep.subr.bf16.mxu0 0
          %968 = vmatpush1.bf16.msra.mxu0 %v614
          %969 = vmatprep.subr.bf16.mxu0 0
          %970 = vmatpush1.bf16.msra.mxu0 %v615
          %971 = vmatprep.subr.bf16.mxu0 0
          %972 = vmatpush1.bf16.msra.mxu0 0
          %973 = vmatprep.subr.bf16.mxu0 0
          %974 = vmatpush1.bf16.msra.mxu0 0
          %975 = vmatprep.subr.bf16.mxu0 0
          %976 = vmatpush1.bf16.msra.mxu0 0
          %977 = vmatprep.subr.bf16.mxu0 0
          %978 = vmatpush1.bf16.msra.mxu0 0
          %979 = vmatprep.subr.bf16.mxu0 0
          %980 = vmatpush1.bf16.msra.mxu0 0
          %981 = vmatprep.subr.bf16.mxu0 0
          %982 = vmatpush1.bf16.msra.mxu0 0
          %983 = vmatprep.subr.bf16.mxu0 0
          %984 = vmatpush1.bf16.msra.mxu0 0
          %985 = vmatprep.subr.bf16.mxu0 0
          %986 = vmatpush1.bf16.msra.mxu0 0
          %987 = vmatprep.mubr.bf16.mxu0 0
          %988 = vmatmul.mubr.bf16.gmra.mrb[0].mxu0 %v648
          %v989 = vpop.f32.mrb[0].mxu0
          %v990 = vadd.f32 0.0, %v989
          %v991 = vpop.f32.mrb[0].mxu0
          %v992 = vpop.f32.mrb[0].mxu0
          %v993 = vadd.f32 0.0, %v992
          %v994 = vpop.f32.mrb[0].mxu0
          %995 = vmatprep.mubr.bf16.mxu0 0
          %996 = vmatmul.mubr.bf16.gmra.mrb[0].mxu0 %v649
          %v997 = vpop.f32.mrb[0].mxu0
          %v998 = vadd.f32 0.0, %v997
          %v999 = vpop.f32.mrb[0].mxu0
          %v1000 = vpop.f32.mrb[0].mxu0
          %v1001 = vadd.f32 0.0, %v1000
          %v1002 = vpop.f32.mrb[0].mxu0
          %1003 = vmatprep.mubr.bf16.mxu0 0
          %1004 = vmatmul.mubr.bf16.gmra.mrb[0].mxu0 %v650
          %v1005 = vpop.f32.mrb[0].mxu0
          %v1006 = vadd.f32 0.0, %v1005
          %v1007 = vpop.f32.mrb[0].mxu0
          %v1008 = vpop.f32.mrb[0].mxu0
          %v1009 = vadd.f32 0.0, %v1008
          %v1010 = vpop.f32.mrb[0].mxu0
          %1011 = vmatprep.mubr.bf16.mxu0 0
          %1012 = vmatmul.mubr.bf16.gmra.mrb[0].mxu0 %v651
          %v1013 = vpop.f32.mrb[0].mxu0
          %v1014 = vadd.f32 0.0, %v1013
          %v1015 = vpop.f32.mrb[0].mxu0
          %v1016 = vpop.f32.mrb[0].mxu0
          %v1017 = vadd.f32 0.0, %v1016
          %v1018 = vpop.f32.mrb[0].mxu0
          %1019 = vmatprep.mubr.bf16.mxu0 0
          %1020 = vmatmul.mubr.bf16.gmra.mrb[0].mxu0 %v652
          %v1021 = vpop.f32.mrb[0].mxu0
          %v1022 = vadd.f32 0.0, %v1021
          %v1023 = vpop.f32.mrb[0].mxu0
          %v1024 = vpop.f32.mrb[0].mxu0
          %v1025 = vadd.f32 0.0, %v1024
          %v1026 = vpop.f32.mrb[0].mxu0
          %1027 = vmatprep.mubr.bf16.mxu0 0
          %1028 = vmatmul.mubr.bf16.gmra.mrb[0].mxu0 %v653
          %v1029 = vpop.f32.mrb[0].mxu0
          %v1030 = vadd.f32 0.0, %v1029
          %v1031 = vpop.f32.mrb[0].mxu0
          %v1032 = vpop.f32.mrb[0].mxu0
          %v1033 = vadd.f32 0.0, %v1032
          %v1034 = vpop.f32.mrb[0].mxu0
          %1035 = vmatprep.mubr.bf16.mxu0 0
          %1036 = vmatmul.mubr.bf16.gmra.mrb[0].mxu0 %v654
          %v1037 = vpop.f32.mrb[0].mxu0
          %v1038 = vadd.f32 0.0, %v1037
          %v1039 = vpop.f32.mrb[0].mxu0
          %v1040 = vpop.f32.mrb[0].mxu0
          %v1041 = vadd.f32 0.0, %v1040
          %v1042 = vpop.f32.mrb[0].mxu0
          %1043 = vmatprep.mubr.bf16.mxu0 0
          %1044 = vmatmul.mubr.bf16.gmra.mrb[0].mxu0 %v655
          %v1045 = vpop.f32.mrb[0].mxu0
          %v1046 = vadd.f32 0.0, %v1045
          %v1047 = vpop.f32.mrb[0].mxu0
          %v1048 = vpop.f32.mrb[0].mxu0
          %v1049 = vadd.f32 0.0, %v1048
          %v1050 = vpop.f32.mrb[0].mxu0
          %1051 = vdwg.mxu0
          %v1052 = vpack.c.bf16 %v702, %v699
          %v1053 = vpack.c.bf16 %v710, %v707
          %v1054 = vpack.c.bf16 %v718, %v715
          %v1055 = vpack.c.bf16 %v726, %v723
          %v1056 = vpack.c.bf16 %v734, %v731
          %v1057 = vpack.c.bf16 %v742, %v739
          %v1058 = vpack.c.bf16 %v750, %v747
          %v1059 = vpack.c.bf16 %v758, %v755
          %v1060 = vpack.c.bf16 %v799, %v796
          %v1061 = vpack.c.bf16 %v807, %v804
          %v1062 = vpack.c.bf16 %v815, %v812
          %v1063 = vpack.c.bf16 %v823, %v820
          %v1064 = vpack.c.bf16 %v831, %v828
          %v1065 = vpack.c.bf16 %v839, %v836
          %v1066 = vpack.c.bf16 %v847, %v844
          %v1067 = vpack.c.bf16 %v855, %v852
          %v1068 = vpack.c.bf16 %v896, %v893
          %v1069 = vpack.c.bf16 %v904, %v901
          %v1070 = vpack.c.bf16 %v912, %v909
          %v1071 = vpack.c.bf16 %v920, %v917
          %v1072 = vpack.c.bf16 %v928, %v925
          %v1073 = vpack.c.bf16 %v936, %v933
          %v1074 = vpack.c.bf16 %v944, %v941
          %v1075 = vpack.c.bf16 %v952, %v949
          %v1076 = vpack.c.bf16 %v993, %v990
          %v1077 = vpack.c.bf16 %v1001, %v998
          %v1078 = vpack.c.bf16 %v1009, %v1006
          %v1079 = vpack.c.bf16 %v1017, %v1014
          %v1080 = vpack.c.bf16 %v1025, %v1022
          %v1081 = vpack.c.bf16 %v1033, %v1030
          %v1082 = vpack.c.bf16 %v1041, %v1038
          %v1083 = vpack.c.bf16 %v1049, %v1046
          %1084 = vxpose.xlu0.c.b16.start [1/8] %v1052, 128
          %1085 = vxpose.xlu0.c.b16.cont [2/8] %v1053, 128
          %1086 = vxpose.xlu0.c.b16.cont [3/8] %v1054, 128
          %1087 = vxpose.xlu0.c.b16.cont [4/8] %v1055, 128
          %1088 = vxpose.xlu0.c.b16.cont [5/8] %v1056, 128
          %1089 = vxpose.xlu0.c.b16.cont [6/8] %v1057, 128
          %1090 = vxpose.xlu0.c.b16.cont [7/8] %v1058, 128
          %1091 = vxpose.xlu0.c.b16.end [8/8] %v1059, 128
          %v1092 = vpop.trf.xlu0
          %v1093 = vpop.trf.xlu0
          %v1094 = vpop.trf.xlu0
          %v1095 = vpop.trf.xlu0
          %v1096 = vpop.trf.xlu0
          %v1097 = vpop.trf.xlu0
          %v1098 = vpop.trf.xlu0
          %v1099 = vpop.trf.xlu0
          %1100 = vxpose.xlu0.c.b16.start [1/8] %v1060, 128
          %1101 = vxpose.xlu0.c.b16.cont [2/8] %v1061, 128
          %1102 = vxpose.xlu0.c.b16.cont [3/8] %v1062, 128
          %1103 = vxpose.xlu0.c.b16.cont [4/8] %v1063, 128
          %1104 = vxpose.xlu0.c.b16.cont [5/8] %v1064, 128
          %1105 = vxpose.xlu0.c.b16.cont [6/8] %v1065, 128
          %1106 = vxpose.xlu0.c.b16.cont [7/8] %v1066, 128
          %1107 = vxpose.xlu0.c.b16.end [8/8] %v1067, 128
          %v1108 = vpop.trf.xlu0
          %v1109 = vpop.trf.xlu0
          %v1110 = vpop.trf.xlu0
          %v1111 = vpop.trf.xlu0
          %v1112 = vpop.trf.xlu0
          %v1113 = vpop.trf.xlu0
          %v1114 = vpop.trf.xlu0
          %v1115 = vpop.trf.xlu0
          %1116 = vxpose.xlu0.c.b16.start [1/8] %v1068, 128
          %1117 = vxpose.xlu0.c.b16.cont [2/8] %v1069, 128
          %1118 = vxpose.xlu0.c.b16.cont [3/8] %v1070, 128
          %1119 = vxpose.xlu0.c.b16.cont [4/8] %v1071, 128
          %1120 = vxpose.xlu0.c.b16.cont [5/8] %v1072, 128
          %1121 = vxpose.xlu0.c.b16.cont [6/8] %v1073, 128
          %1122 = vxpose.xlu0.c.b16.cont [7/8] %v1074, 128
          %1123 = vxpose.xlu0.c.b16.end [8/8] %v1075, 128
          %v1124 = vpop.trf.xlu0
          %v1125 = vpop.trf.xlu0
          %v1126 = vpop.trf.xlu0
          %v1127 = vpop.trf.xlu0
          %v1128 = vpop.trf.xlu0
          %v1129 = vpop.trf.xlu0
          %v1130 = vpop.trf.xlu0
          %v1131 = vpop.trf.xlu0
          %1132 = vxpose.xlu0.c.b16.start [1/8] %v1076, 128
          %1133 = vxpose.xlu0.c.b16.cont [2/8] %v1077, 128
          %1134 = vxpose.xlu0.c.b16.cont [3/8] %v1078, 128
          %1135 = vxpose.xlu0.c.b16.cont [4/8] %v1079, 128
          %1136 = vxpose.xlu0.c.b16.cont [5/8] %v1080, 128
          %1137 = vxpose.xlu0.c.b16.cont [6/8] %v1081, 128
          %1138 = vxpose.xlu0.c.b16.cont [7/8] %v1082, 128
          %1139 = vxpose.xlu0.c.b16.end [8/8] %v1083, 128
          %v1140 = vpop.trf.xlu0
          %v1141 = vpop.trf.xlu0
          %v1142 = vpop.trf.xlu0
          %v1143 = vpop.trf.xlu0
          %v1144 = vpop.trf.xlu0
          %v1145 = vpop.trf.xlu0
          %v1146 = vpop.trf.xlu0
          %v1147 = vpop.trf.xlu0
          %v1212 = vunpack.c.l.b16 %v244
          %v1213 = vunpack.c.l.b16 %v245
          %v1214 = vunpack.c.l.b16 %v246
          %v1215 = vunpack.c.l.b16 %v247
          %v1216 = vunpack.c.l.b16 %v248
          %v1217 = vunpack.c.l.b16 %v249
          %v1218 = vunpack.c.l.b16 %v250
          %v1219 = vunpack.c.l.b16 %v251
          %v1220 = vunpack.c.l.b16 %v252
          %v1221 = vunpack.c.l.b16 %v253
          %v1222 = vunpack.c.l.b16 %v254
          %v1223 = vunpack.c.l.b16 %v255
          %v1224 = vunpack.c.l.b16 %v256
          %v1225 = vunpack.c.l.b16 %v257
          %v1226 = vunpack.c.l.b16 %v258
          %v1227 = vunpack.c.l.b16 %v259
          %v1228 = vunpack.c.l.b16 %v260
          %v1229 = vunpack.c.l.b16 %v261
          %v1230 = vunpack.c.l.b16 %v262
          %v1231 = vunpack.c.l.b16 %v263
          %v1232 = vunpack.c.l.b16 %v264
          %v1233 = vunpack.c.l.b16 %v265
          %v1234 = vunpack.c.l.b16 %v266
          %v1235 = vunpack.c.l.b16 %v267
          %v1236 = vunpack.c.l.b16 %v268
          %v1237 = vunpack.c.l.b16 %v269
          %v1238 = vunpack.c.l.b16 %v270
          %v1239 = vunpack.c.l.b16 %v271
          %v1240 = vunpack.c.l.b16 %v272
          %v1241 = vunpack.c.l.b16 %v273
          %v1242 = vunpack.c.l.b16 %v274
          %v1243 = vunpack.c.l.b16 %v275
          %v1244 = vunpack.c.l.b16 %v276
          %v1245 = vunpack.c.l.b16 %v277
          %v1246 = vunpack.c.l.b16 %v278
          %v1247 = vunpack.c.l.b16 %v279
          %v1248 = vunpack.c.l.b16 %v280
          %v1249 = vunpack.c.l.b16 %v281
          %v1250 = vunpack.c.l.b16 %v282
          %v1251 = vunpack.c.l.b16 %v283
          %v1252 = vunpack.c.l.b16 %v284
          %v1253 = vunpack.c.l.b16 %v285
          %v1254 = vunpack.c.l.b16 %v286
          %v1255 = vunpack.c.l.b16 %v287
          %v1256 = vunpack.c.l.b16 %v288
          %v1257 = vunpack.c.l.b16 %v289
          %v1258 = vunpack.c.l.b16 %v290
          %v1259 = vunpack.c.l.b16 %v291
          %v1260 = vunpack.c.l.b16 %v292
          %v1261 = vunpack.c.l.b16 %v293
          %v1262 = vunpack.c.l.b16 %v294
          %v1263 = vunpack.c.l.b16 %v295
          %v1264 = vunpack.c.l.b16 %v296
          %v1265 = vunpack.c.l.b16 %v297
          %v1266 = vunpack.c.l.b16 %v298
          %v1267 = vunpack.c.l.b16 %v299
          %v1268 = vunpack.c.l.b16 %v300
          %v1269 = vunpack.c.l.b16 %v301
          %v1270 = vunpack.c.l.b16 %v302
          %v1271 = vunpack.c.l.b16 %v303
          %v1272 = vunpack.c.l.b16 %v304
          %v1273 = vunpack.c.l.b16 %v305
          %v1274 = vunpack.c.l.b16 %v306
          %v1275 = vunpack.c.l.b16 %v307
          %v1276 = vpack.c.b16 %v1213, %v1212
          %v1277 = vpack.c.b16 %v1215, %v1214
          %v1278 = vpack.c.b16 %v1217, %v1216
          %v1279 = vpack.c.b16 %v1219, %v1218
          %v1280 = vpack.c.b16 %v1221, %v1220
          %v1281 = vpack.c.b16 %v1223, %v1222
          %v1282 = vpack.c.b16 %v1225, %v1224
          %v1283 = vpack.c.b16 %v1227, %v1226
          %v1284 = vpack.c.b16 %v1229, %v1228
          %v1285 = vpack.c.b16 %v1231, %v1230
          %v1286 = vpack.c.b16 %v1233, %v1232
          %v1287 = vpack.c.b16 %v1235, %v1234
          %v1288 = vpack.c.b16 %v1237, %v1236
          %v1289 = vpack.c.b16 %v1239, %v1238
          %v1290 = vpack.c.b16 %v1241, %v1240
          %v1291 = vpack.c.b16 %v1243, %v1242
          %v1292 = vpack.c.b16 %v1245, %v1244
          %v1293 = vpack.c.b16 %v1247, %v1246
          %v1294 = vpack.c.b16 %v1249, %v1248
          %v1295 = vpack.c.b16 %v1251, %v1250
          %v1296 = vpack.c.b16 %v1253, %v1252
          %v1297 = vpack.c.b16 %v1255, %v1254
          %v1298 = vpack.c.b16 %v1257, %v1256
          %v1299 = vpack.c.b16 %v1259, %v1258
          %v1300 = vpack.c.b16 %v1261, %v1260
          %v1301 = vpack.c.b16 %v1263, %v1262
          %v1302 = vpack.c.b16 %v1265, %v1264
          %v1303 = vpack.c.b16 %v1267, %v1266
          %v1304 = vpack.c.b16 %v1269, %v1268
          %v1305 = vpack.c.b16 %v1271, %v1270
          %v1306 = vpack.c.b16 %v1273, %v1272
          %v1307 = vpack.c.b16 %v1275, %v1274
          %1340 = vmatprep.subr.bf16.mxu0 0
          %1341 = vmatpush1.bf16.msra.mxu0 %v1276
          %1342 = vmatprep.subr.bf16.mxu0 0
          %1343 = vmatpush1.bf16.msra.mxu0 %v1277
          %1344 = vmatprep.subr.bf16.mxu0 0
          %1345 = vmatpush1.bf16.msra.mxu0 %v1278
          %1346 = vmatprep.subr.bf16.mxu0 0
          %1347 = vmatpush1.bf16.msra.mxu0 %v1279
          %1348 = vmatprep.subr.bf16.mxu0 0
          %1349 = vmatpush1.bf16.msra.mxu0 %v1280
          %1350 = vmatprep.subr.bf16.mxu0 0
          %1351 = vmatpush1.bf16.msra.mxu0 %v1281
          %1352 = vmatprep.subr.bf16.mxu0 0
          %1353 = vmatpush1.bf16.msra.mxu0 %v1282
          %1354 = vmatprep.subr.bf16.mxu0 0
          %1355 = vmatpush1.bf16.msra.mxu0 %v1283
          %1356 = vmatprep.subr.bf16.mxu0 0
          %1357 = vmatpush1.bf16.msra.mxu0 %v1284
          %1358 = vmatprep.subr.bf16.mxu0 0
          %1359 = vmatpush1.bf16.msra.mxu0 %v1285
          %1360 = vmatprep.subr.bf16.mxu0 0
          %1361 = vmatpush1.bf16.msra.mxu0 %v1286
          %1362 = vmatprep.subr.bf16.mxu0 0
          %1363 = vmatpush1.bf16.msra.mxu0 %v1287
          %1364 = vmatprep.subr.bf16.mxu0 0
          %1365 = vmatpush1.bf16.msra.mxu0 %v1288
          %1366 = vmatprep.subr.bf16.mxu0 0
          %1367 = vmatpush1.bf16.msra.mxu0 %v1289
          %1368 = vmatprep.subr.bf16.mxu0 0
          %1369 = vmatpush1.bf16.msra.mxu0 %v1290
          %1370 = vmatprep.subr.bf16.mxu0 0
          %1371 = vmatpush1.bf16.msra.mxu0 %v1291
          %1372 = vmatprep.mubr.bf16.mxu0 %v1108
          %1373 = vmatmul.mubr.bf16.gmra.mrb[0].mxu0 %v1092
          %v1374 = vpop.f32.mrb[0].mxu0
          %v1375 = vadd.f32 0.0, %v1374
          %v1376 = vpop.f32.mrb[0].mxu0
          %v1377 = vpop.f32.mrb[0].mxu0
          %v1378 = vadd.f32 0.0, %v1377
          %v1379 = vpop.f32.mrb[0].mxu0
          %1380 = vmatprep.mubr.bf16.mxu0 %v1109
          %1381 = vmatmul.mubr.bf16.gmra.mrb[0].mxu0 %v1093
          %v1382 = vpop.f32.mrb[0].mxu0
          %v1383 = vadd.f32 0.0, %v1382
          %v1384 = vpop.f32.mrb[0].mxu0
          %v1385 = vpop.f32.mrb[0].mxu0
          %v1386 = vadd.f32 0.0, %v1385
          %v1387 = vpop.f32.mrb[0].mxu0
          %1388 = vmatprep.mubr.bf16.mxu0 %v1110
          %1389 = vmatmul.mubr.bf16.gmra.mrb[0].mxu0 %v1094
          %v1390 = vpop.f32.mrb[0].mxu0
          %v1391 = vadd.f32 0.0, %v1390
          %v1392 = vpop.f32.mrb[0].mxu0
          %v1393 = vpop.f32.mrb[0].mxu0
          %v1394 = vadd.f32 0.0, %v1393
          %v1395 = vpop.f32.mrb[0].mxu0
          %1396 = vmatprep.mubr.bf16.mxu0 %v1111
          %1397 = vmatmul.mubr.bf16.gmra.mrb[0].mxu0 %v1095
          %v1398 = vpop.f32.mrb[0].mxu0
          %v1399 = vadd.f32 0.0, %v1398
          %v1400 = vpop.f32.mrb[0].mxu0
          %v1401 = vpop.f32.mrb[0].mxu0
          %v1402 = vadd.f32 0.0, %v1401
          %v1403 = vpop.f32.mrb[0].mxu0
          %1404 = vmatprep.mubr.bf16.mxu0 %v1112
          %1405 = vmatmul.mubr.bf16.gmra.mrb[0].mxu0 %v1096
          %v1406 = vpop.f32.mrb[0].mxu0
          %v1407 = vadd.f32 0.0, %v1406
          %v1408 = vpop.f32.mrb[0].mxu0
          %v1409 = vpop.f32.mrb[0].mxu0
          %v1410 = vadd.f32 0.0, %v1409
          %v1411 = vpop.f32.mrb[0].mxu0
          %1412 = vmatprep.mubr.bf16.mxu0 %v1113
          %1413 = vmatmul.mubr.bf16.gmra.mrb[0].mxu0 %v1097
          %v1414 = vpop.f32.mrb[0].mxu0
          %v1415 = vadd.f32 0.0, %v1414
          %v1416 = vpop.f32.mrb[0].mxu0
          %v1417 = vpop.f32.mrb[0].mxu0
          %v1418 = vadd.f32 0.0, %v1417
          %v1419 = vpop.f32.mrb[0].mxu0
          %1420 = vmatprep.mubr.bf16.mxu0 %v1114
          %1421 = vmatmul.mubr.bf16.gmra.mrb[0].mxu0 %v1098
          %v1422 = vpop.f32.mrb[0].mxu0
          %v1423 = vadd.f32 0.0, %v1422
          %v1424 = vpop.f32.mrb[0].mxu0
          %v1425 = vpop.f32.mrb[0].mxu0
          %v1426 = vadd.f32 0.0, %v1425
          %v1427 = vpop.f32.mrb[0].mxu0
          %1428 = vmatprep.mubr.bf16.mxu0 %v1115
          %1429 = vmatmul.mubr.bf16.gmra.mrb[0].mxu0 %v1099
          %v1430 = vpop.f32.mrb[0].mxu0
          %v1431 = vadd.f32 0.0, %v1430
          %v1432 = vpop.f32.mrb[0].mxu0
          %v1433 = vpop.f32.mrb[0].mxu0
          %v1434 = vadd.f32 0.0, %v1433
          %v1435 = vpop.f32.mrb[0].mxu0
          %1436 = vdwg.mxu0
          %1437 = vmatprep.subr.bf16.mxu0 0
          %1438 = vmatpush1.bf16.msra.mxu0 %v1292
          %1439 = vmatprep.subr.bf16.mxu0 0
          %1440 = vmatpush1.bf16.msra.mxu0 %v1293
          %1441 = vmatprep.subr.bf16.mxu0 0
          %1442 = vmatpush1.bf16.msra.mxu0 %v1294
          %1443 = vmatprep.subr.bf16.mxu0 0
          %1444 = vmatpush1.bf16.msra.mxu0 %v1295
          %1445 = vmatprep.subr.bf16.mxu0 0
          %1446 = vmatpush1.bf16.msra.mxu0 %v1296
          %1447 = vmatprep.subr.bf16.mxu0 0
          %1448 = vmatpush1.bf16.msra.mxu0 %v1297
          %1449 = vmatprep.subr.bf16.mxu0 0
          %1450 = vmatpush1.bf16.msra.mxu0 %v1298
          %1451 = vmatprep.subr.bf16.mxu0 0
          %1452 = vmatpush1.bf16.msra.mxu0 %v1299
          %1453 = vmatprep.subr.bf16.mxu0 0
          %1454 = vmatpush1.bf16.msra.mxu0 %v1300
          %1455 = vmatprep.subr.bf16.mxu0 0
          %1456 = vmatpush1.bf16.msra.mxu0 %v1301
          %1457 = vmatprep.subr.bf16.mxu0 0
          %1458 = vmatpush1.bf16.msra.mxu0 %v1302
          %1459 = vmatprep.subr.bf16.mxu0 0
          %1460 = vmatpush1.bf16.msra.mxu0 %v1303
          %1461 = vmatprep.subr.bf16.mxu0 0
          %1462 = vmatpush1.bf16.msra.mxu0 %v1304
          %1463 = vmatprep.subr.bf16.mxu0 0
          %1464 = vmatpush1.bf16.msra.mxu0 %v1305
          %1465 = vmatprep.subr.bf16.mxu0 0
          %1466 = vmatpush1.bf16.msra.mxu0 %v1306
          %1467 = vmatprep.subr.bf16.mxu0 0
          %1468 = vmatpush1.bf16.msra.mxu0 %v1307
          %1469 = vmatprep.mubr.bf16.mxu0 %v1140
          %1470 = vmatmul.mubr.bf16.gmra.mrb[0].mxu0 %v1124
          %v1471 = vpop.f32.mrb[0].mxu0
          %v1472 = vadd.f32 %v1375, %v1471
          %v1473 = vpop.f32.mrb[0].mxu0
          %v1474 = vpop.f32.mrb[0].mxu0
          %v1475 = vadd.f32 %v1378, %v1474
          %v1476 = vpop.f32.mrb[0].mxu0
          %1477 = vmatprep.mubr.bf16.mxu0 %v1141
          %1478 = vmatmul.mubr.bf16.gmra.mrb[0].mxu0 %v1125
          %v1479 = vpop.f32.mrb[0].mxu0
          %v1480 = vadd.f32 %v1383, %v1479
          %v1481 = vpop.f32.mrb[0].mxu0
          %v1482 = vpop.f32.mrb[0].mxu0
          %v1483 = vadd.f32 %v1386, %v1482
          %v1484 = vpop.f32.mrb[0].mxu0
          %1485 = vmatprep.mubr.bf16.mxu0 %v1142
          %1486 = vmatmul.mubr.bf16.gmra.mrb[0].mxu0 %v1126
          %v1487 = vpop.f32.mrb[0].mxu0
          %v1488 = vadd.f32 %v1391, %v1487
          %v1489 = vpop.f32.mrb[0].mxu0
          %v1490 = vpop.f32.mrb[0].mxu0
          %v1491 = vadd.f32 %v1394, %v1490
          %v1492 = vpop.f32.mrb[0].mxu0
          %1493 = vmatprep.mubr.bf16.mxu0 %v1143
          %1494 = vmatmul.mubr.bf16.gmra.mrb[0].mxu0 %v1127
          %v1495 = vpop.f32.mrb[0].mxu0
          %v1496 = vadd.f32 %v1399, %v1495
          %v1497 = vpop.f32.mrb[0].mxu0
          %v1498 = vpop.f32.mrb[0].mxu0
          %v1499 = vadd.f32 %v1402, %v1498
          %v1500 = vpop.f32.mrb[0].mxu0
          %1501 = vmatprep.mubr.bf16.mxu0 %v1144
          %1502 = vmatmul.mubr.bf16.gmra.mrb[0].mxu0 %v1128
          %v1503 = vpop.f32.mrb[0].mxu0
          %v1504 = vadd.f32 %v1407, %v1503
          %v1505 = vpop.f32.mrb[0].mxu0
          %v1506 = vpop.f32.mrb[0].mxu0
          %v1507 = vadd.f32 %v1410, %v1506
          %v1508 = vpop.f32.mrb[0].mxu0
          %1509 = vmatprep.mubr.bf16.mxu0 %v1145
          %1510 = vmatmul.mubr.bf16.gmra.mrb[0].mxu0 %v1129
          %v1511 = vpop.f32.mrb[0].mxu0
          %v1512 = vadd.f32 %v1415, %v1511
          %v1513 = vpop.f32.mrb[0].mxu0
          %v1514 = vpop.f32.mrb[0].mxu0
          %v1515 = vadd.f32 %v1418, %v1514
          %v1516 = vpop.f32.mrb[0].mxu0
          %1517 = vmatprep.mubr.bf16.mxu0 %v1146
          %1518 = vmatmul.mubr.bf16.gmra.mrb[0].mxu0 %v1130
          %v1519 = vpop.f32.mrb[0].mxu0
          %v1520 = vadd.f32 %v1423, %v1519
          %v1521 = vpop.f32.mrb[0].mxu0
          %v1522 = vpop.f32.mrb[0].mxu0
          %v1523 = vadd.f32 %v1426, %v1522
          %v1524 = vpop.f32.mrb[0].mxu0
          %1525 = vmatprep.mubr.bf16.mxu0 %v1147
          %1526 = vmatmul.mubr.bf16.gmra.mrb[0].mxu0 %v1131
          %v1527 = vpop.f32.mrb[0].mxu0
          %v1528 = vadd.f32 %v1431, %v1527
          %v1529 = vpop.f32.mrb[0].mxu0
          %v1530 = vpop.f32.mrb[0].mxu0
          %v1531 = vadd.f32 %v1434, %v1530
          %v1532 = vpop.f32.mrb[0].mxu0
          %1533 = vdwg.mxu0
          %v1534 = vmul.f32 %v1472, 0.25
          %v1535 = vmul.f32 %v1475, 0.25
          %v1536 = vmul.f32 %v1480, 0.25
          %v1537 = vmul.f32 %v1483, 0.25
          %v1538 = vmul.f32 %v1488, 0.25
          %v1539 = vmul.f32 %v1491, 0.25
          %v1540 = vmul.f32 %v1496, 0.25
          %v1541 = vmul.f32 %v1499, 0.25
          %v1542 = vmul.f32 %v1504, 0.25
          %v1543 = vmul.f32 %v1507, 0.25
          %v1544 = vmul.f32 %v1512, 0.25
          %v1545 = vmul.f32 %v1515, 0.25
          %v1546 = vmul.f32 %v1520, 0.25
          %v1547 = vmul.f32 %v1523, 0.25
          %v1548 = vmul.f32 %v1528, 0.25
          %v1549 = vmul.f32 %v1531, 0.25
          %v1550 = vld [vmem:[#allocation2] sm:$0xff]
          %v1551 = vpack.c.bf16 %v1550, %v1550
          %v1552 = vpack.c.bf16 %v1535, %v1534
          %v1553 = vpack.c.bf16 %v1537, %v1536
          %v1554 = vpack.c.bf16 %v1539, %v1538
          %v1555 = vpack.c.bf16 %v1541, %v1540
          %v1556 = vpack.c.bf16 %v1543, %v1542
          %v1557 = vpack.c.bf16 %v1545, %v1544
          %v1558 = vpack.c.bf16 %v1547, %v1546
          %v1559 = vpack.c.bf16 %v1549, %v1548
          %1560 = vmatprep.subr.bf16.mxu0 0
          %1561 = vmatpush1.bf16.msra.mxu0 %v1552
          %1562 = vmatprep.subr.bf16.mxu0 0
          %1563 = vmatpush1.bf16.msra.mxu0 %v1553
          %1564 = vmatprep.subr.bf16.mxu0 0
          %1565 = vmatpush1.bf16.msra.mxu0 %v1554
          %1566 = vmatprep.subr.bf16.mxu0 0
          %1567 = vmatpush1.bf16.msra.mxu0 %v1555
          %1568 = vmatprep.subr.bf16.mxu0 0
          %1569 = vmatpush1.bf16.msra.mxu0 %v1556
          %1570 = vmatprep.subr.bf16.mxu0 0
          %1571 = vmatpush1.bf16.msra.mxu0 %v1557
          %1572 = vmatprep.subr.bf16.mxu0 0
          %1573 = vmatpush1.bf16.msra.mxu0 %v1558
          %1574 = vmatprep.subr.bf16.mxu0 0
          %1575 = vmatpush1.bf16.msra.mxu0 %v1559
          %1576 = vmatprep.subr.bf16.mxu0 0
          %1577 = vmatpush1.bf16.msra.mxu0 0
          %1578 = vmatprep.subr.bf16.mxu0 0
          %1579 = vmatpush1.bf16.msra.mxu0 0
          %1580 = vmatprep.subr.bf16.mxu0 0
          %1581 = vmatpush1.bf16.msra.mxu0 0
          %1582 = vmatprep.subr.bf16.mxu0 0
          %1583 = vmatpush1.bf16.msra.mxu0 0
          %1584 = vmatprep.subr.bf16.mxu0 0
          %1585 = vmatpush1.bf16.msra.mxu0 0
          %1586 = vmatprep.subr.bf16.mxu0 0
          %1587 = vmatpush1.bf16.msra.mxu0 0
          %1588 = vmatprep.subr.bf16.mxu0 0
          %1589 = vmatpush1.bf16.msra.mxu0 0
          %1590 = vmatprep.subr.bf16.mxu0 0
          %1591 = vmatpush1.bf16.msra.mxu0 0
          %1592 = vmatprep.mubr.bf16.mxu0 0
          %1593 = vmatmul.mubr.bf16.gmra.mrb[0].mxu0 %v1551
          %v1594 = vpop.f32.mrb[0].mxu0
          %v1595 = vadd.f32 0.0, %v1594
          %v1596 = vpop.f32.mrb[0].mxu0
          %v1597 = vpop.f32.mrb[0].mxu0
          %v1598 = vpop.f32.mrb[0].mxu0
          %1599 = vdwg.mxu0
          %1600 = vst [vmem:[#allocation2] sm:$0xff] %v1595
        $region52: #{tpu_custom_call.1} parent=31 // pred_fallthru
          _
        %p1601 = scmp.lt.s32.totalorder %s19, 2
        // Predicated region
        $region53: #{tpu_custom_call.1} parent=31 // pred_check
          %p1602 = pneg %p1601
        $region54: #{tpu_custom_call.1} parent=31 // pred_check_branch
          %1604 = sbr.rel (%p1602) target = $region56
        $region55: #{tpu_custom_call.1} parent=31 // pred_region
          %v1669 = vunpack.c.l.b16 %v244
          %v1670 = vunpack.c.l.b16 %v245
          %v1671 = vunpack.c.l.b16 %v246
          %v1672 = vunpack.c.l.b16 %v247
          %v1673 = vunpack.c.l.b16 %v248
          %v1674 = vunpack.c.l.b16 %v249
          %v1675 = vunpack.c.l.b16 %v250
          %v1676 = vunpack.c.l.b16 %v251
          %v1677 = vunpack.c.l.b16 %v252
          %v1678 = vunpack.c.l.b16 %v253
          %v1679 = vunpack.c.l.b16 %v254
          %v1680 = vunpack.c.l.b16 %v255
          %v1681 = vunpack.c.l.b16 %v256
          %v1682 = vunpack.c.l.b16 %v257
          %v1683 = vunpack.c.l.b16 %v258
          %v1684 = vunpack.c.l.b16 %v259
          %v1685 = vunpack.c.l.b16 %v260
          %v1686 = vunpack.c.l.b16 %v261
          %v1687 = vunpack.c.l.b16 %v262
          %v1688 = vunpack.c.l.b16 %v263
          %v1689 = vunpack.c.l.b16 %v264
          %v1690 = vunpack.c.l.b16 %v265
          %v1691 = vunpack.c.l.b16 %v266
          %v1692 = vunpack.c.l.b16 %v267
          %v1693 = vunpack.c.l.b16 %v268
          %v1694 = vunpack.c.l.b16 %v269
          %v1695 = vunpack.c.l.b16 %v270
          %v1696 = vunpack.c.l.b16 %v271
          %v1697 = vunpack.c.l.b16 %v272
          %v1698 = vunpack.c.l.b16 %v273
          %v1699 = vunpack.c.l.b16 %v274
          %v1700 = vunpack.c.l.b16 %v275
          %v1701 = vunpack.c.l.b16 %v276
          %v1702 = vunpack.c.l.b16 %v277
          %v1703 = vunpack.c.l.b16 %v278
          %v1704 = vunpack.c.l.b16 %v279
          %v1705 = vunpack.c.l.b16 %v280
          %v1706 = vunpack.c.l.b16 %v281
          %v1707 = vunpack.c.l.b16 %v282
          %v1708 = vunpack.c.l.b16 %v283
          %v1709 = vunpack.c.l.b16 %v284
          %v1710 = vunpack.c.l.b16 %v285
          %v1711 = vunpack.c.l.b16 %v286
          %v1712 = vunpack.c.l.b16 %v287
          %v1713 = vunpack.c.l.b16 %v288
          %v1714 = vunpack.c.l.b16 %v289
          %v1715 = vunpack.c.l.b16 %v290
          %v1716 = vunpack.c.l.b16 %v291
          %v1717 = vunpack.c.l.b16 %v292
          %v1718 = vunpack.c.l.b16 %v293
          %v1719 = vunpack.c.l.b16 %v294
          %v1720 = vunpack.c.l.b16 %v295
          %v1721 = vunpack.c.l.b16 %v296
          %v1722 = vunpack.c.l.b16 %v297
          %v1723 = vunpack.c.l.b16 %v298
          %v1724 = vunpack.c.l.b16 %v299
          %v1725 = vunpack.c.l.b16 %v300
          %v1726 = vunpack.c.l.b16 %v301
          %v1727 = vunpack.c.l.b16 %v302
          %v1728 = vunpack.c.l.b16 %v303
          %v1729 = vunpack.c.l.b16 %v304
          %v1730 = vunpack.c.l.b16 %v305
          %v1731 = vunpack.c.l.b16 %v306
          %v1732 = vunpack.c.l.b16 %v307
          %v1733 = vpack.c.b16 %v1670, %v1669
          %v1734 = vpack.c.b16 %v1672, %v1671
          %v1735 = vpack.c.b16 %v1674, %v1673
          %v1736 = vpack.c.b16 %v1676, %v1675
          %v1737 = vpack.c.b16 %v1678, %v1677
          %v1738 = vpack.c.b16 %v1680, %v1679
          %v1739 = vpack.c.b16 %v1682, %v1681
          %v1740 = vpack.c.b16 %v1684, %v1683
          %v1741 = vpack.c.b16 %v1686, %v1685
          %v1742 = vpack.c.b16 %v1688, %v1687
          %v1743 = vpack.c.b16 %v1690, %v1689
          %v1744 = vpack.c.b16 %v1692, %v1691
          %v1745 = vpack.c.b16 %v1694, %v1693
          %v1746 = vpack.c.b16 %v1696, %v1695
          %v1747 = vpack.c.b16 %v1698, %v1697
          %v1748 = vpack.c.b16 %v1700, %v1699
          %v1749 = vpack.c.b16 %v1702, %v1701
          %v1750 = vpack.c.b16 %v1704, %v1703
          %v1751 = vpack.c.b16 %v1706, %v1705
          %v1752 = vpack.c.b16 %v1708, %v1707
          %v1753 = vpack.c.b16 %v1710, %v1709
          %v1754 = vpack.c.b16 %v1712, %v1711
          %v1755 = vpack.c.b16 %v1714, %v1713
          %v1756 = vpack.c.b16 %v1716, %v1715
          %v1757 = vpack.c.b16 %v1718, %v1717
          %v1758 = vpack.c.b16 %v1720, %v1719
          %v1759 = vpack.c.b16 %v1722, %v1721
          %v1760 = vpack.c.b16 %v1724, %v1723
          %v1761 = vpack.c.b16 %v1726, %v1725
          %v1762 = vpack.c.b16 %v1728, %v1727
          %v1763 = vpack.c.b16 %v1730, %v1729
          %v1764 = vpack.c.b16 %v1732, %v1731
          %1797 = vst [vmem:[#allocation3] sm:$0xff] %v1733
          %1798 = vst [vmem:[#allocation3 + $0x8] sm:$0xff] %v1734
          %1799 = vst [vmem:[#allocation3 + $0x10] sm:$0xff] %v1735
          %1800 = vst [vmem:[#allocation3 + $0x18] sm:$0xff] %v1736
          %1801 = vst [vmem:[#allocation3 + $0x20] sm:$0xff] %v1737
          %1802 = vst [vmem:[#allocation3 + $0x28] sm:$0xff] %v1738
          %1803 = vst [vmem:[#allocation3 + $0x30] sm:$0xff] %v1739
          %1804 = vst [vmem:[#allocation3 + $0x38] sm:$0xff] %v1740
          %1805 = vst [vmem:[#allocation3 + $0x40] sm:$0xff] %v1741
          %1806 = vst [vmem:[#allocation3 + $0x48] sm:$0xff] %v1742
          %1807 = vst [vmem:[#allocation3 + $0x50] sm:$0xff] %v1743
          %1808 = vst [vmem:[#allocation3 + $0x58] sm:$0xff] %v1744
          %1809 = vst [vmem:[#allocation3 + $0x60] sm:$0xff] %v1745
          %1810 = vst [vmem:[#allocation3 + $0x68] sm:$0xff] %v1746
          %1811 = vst [vmem:[#allocation3 + $0x70] sm:$0xff] %v1747
          %1812 = vst [vmem:[#allocation3 + $0x78] sm:$0xff] %v1748
          %1813 = vst [vmem:[#allocation3 + $0x80] sm:$0xff] %v1749
          %1814 = vst [vmem:[#allocation3 + $0x88] sm:$0xff] %v1750
          %1815 = vst [vmem:[#allocation3 + $0x90] sm:$0xff] %v1751
          %1816 = vst [vmem:[#allocation3 + $0x98] sm:$0xff] %v1752
          %1817 = vst [vmem:[#allocation3 + $0xa0] sm:$0xff] %v1753
          %1818 = vst [vmem:[#allocation3 + $0xa8] sm:$0xff] %v1754
          %1819 = vst [vmem:[#allocation3 + $0xb0] sm:$0xff] %v1755
          %1820 = vst [vmem:[#allocation3 + $0xb8] sm:$0xff] %v1756
          %1821 = vst [vmem:[#allocation3 + $0xc0] sm:$0xff] %v1757
          %1822 = vst [vmem:[#allocation3 + $0xc8] sm:$0xff] %v1758
          %1823 = vst [vmem:[#allocation3 + $0xd0] sm:$0xff] %v1759
          %1824 = vst [vmem:[#allocation3 + $0xd8] sm:$0xff] %v1760
          %1825 = vst [vmem:[#allocation3 + $0xe0] sm:$0xff] %v1761
          %1826 = vst [vmem:[#allocation3 + $0xe8] sm:$0xff] %v1762
          %1827 = vst [vmem:[#allocation3 + $0xf0] sm:$0xff] %v1763
          %1828 = vst [vmem:[#allocation3 + $0xf8] sm:$0xff] %v1764
          %v1829 = vld [vmem:[#allocation2] sm:$0xff]
          %v1830 = vmax.f32 %v1829, 0.0
          %1831 = vst [vmem:[#allocation2] sm:$0xff] %v1830
        $region56: #{tpu_custom_call.1} parent=31 // pred_fallthru
          _
        %p1832 = scmp.eq.s32.totalorder %s19, 2
        // Predicated region
        $region57: #{tpu_custom_call.1} parent=31 // pred_check
          %p1833 = pneg %p1832
        $region58: #{tpu_custom_call.1} parent=31 // pred_check_branch
          %1835 = sbr.rel (%p1833) target = $region60
        $region59: #{tpu_custom_call.1} parent=31 // pred_region
          %v1836 = vld [vmem:[#allocation2] sm:$0xff]
          %1837 = vst [vmem:[#allocation10] sm:$0xff] %v1836
        $region60: #{tpu_custom_call.1} parent=31 // pred_fallthru
          _
        // Predicated region
        $region61: #{tpu_custom_call.1} parent=31 // pred_check
          %p1838 = pneg %p105
        $region62: #{tpu_custom_call.1} parent=31 // pred_check_branch
          %1840 = sbr.rel (%p1838) target = $region64
        $region63: #{tpu_custom_call.1} parent=31 // pred_region
          %s1842 = ssub.s32 128, 128
          %1843 = vsyncadd [#allocation6], %s1842
          %s1845 = sshll.u32 [#allocation10], 4
          %s1846 = int_to_ptr.vmem [resolvable:$true] %s1845
          %1848 = dma.vmem_to_hbm [thread:$0]  %s1846, 128, %s3, [#allocation6]
        $region64: #{tpu_custom_call.1} parent=31 // pred_fallthru
          _
        // Predicated region
        $region65: #{tpu_custom_call.1} parent=31 // pred_check
          %p1849 = pneg %p105
        $region66: #{tpu_custom_call.1} parent=31 // pred_check_branch
          %1851 = sbr.rel (%p1849) target = $region68
        $region67: #{tpu_custom_call.1} parent=31 // pred_region
          %1852 = dma.done [#allocation6], 128
        $region68: #{tpu_custom_call.1} parent=31 // pred_fallthru
          _
      $region32: #{tpu_custom_call.1} parent=5 // pred_fallthru
        _
      %p1853 = scmp.le.s32.totalorder 2, %s14
      // Predicated region
      $region69: #{tpu_custom_call.1} parent=5 // pred_check
        %p1854 = pneg %p1853
      $region70: #{tpu_custom_call.1} parent=5 // pred_check_branch
        %1856 = sbr.rel (%p1854) target = $region72
      $region71: #{tpu_custom_call.1} parent=5 // pred_region
        %s1857 = ssub.s32 %s14, 2
      $region72: #{tpu_custom_call.1} parent=5 // pred_fallthru
        _
    $region6: #{tpu_custom_call.1} parent=1 // loop_footer
      %s18 = sadd.s32 1, %s14
    $region7: #{tpu_custom_call.1} parent=1 // loop_footer_branch
      %13 = sbr.rel target = $region3
    $region8: #{tpu_custom_call.1} parent=1 // loop_exit
      _
    %1858 = vsyncpa [#allocation5], 1
    %s1859 = scalar_lea.sflag [#allocation5], 1
    %1860 = vsyncpa %s1859, 1
    %1861 = vsyncpa [#allocation8], 1
    %s1862 = scalar_lea.sflag [#allocation8], 1
    %1863 = vsyncpa %s1862, 1
    %1864 = vsyncpa [#allocation6], 1
    %s1865 = scalar_lea.sflag [#allocation6], 1
    %1866 = vsyncpa %s1865, 1

</llo_original>
